<compile_context>
chip_gen: v5e
topology: v5e:2x2
jax: 0.10.0
libtpu: 0.0.40
codegen_flags: <defaults>
</compile_context>

<pallas_src>
import functools

import jax
import jax.numpy as jnp
from jax import lax
from jax.experimental import pallas as pl
from jax.experimental.pallas import tpu as pltpu


def _lstm_activation(gates, c, is_g_mask):
    """PyTorch nn.LSTMCell gate math, gate order (i, f, g, o).

    `gates` is the full (B, 4H) pre-activation block.  sigmoid/tanh are applied
    full-width once and combined with a lane-mask select; the per-gate slices
    then read already-activated values (avoids 4 narrow sliced EUP pushes).
    """
    H = c.shape[-1]
    act = jnp.where(is_g_mask, jnp.tanh(gates), jax.nn.sigmoid(gates))
    i = act[:, 0 * H:1 * H]
    f = act[:, 1 * H:2 * H]
    g = act[:, 2 * H:3 * H]
    o = act[:, 3 * H:4 * H]
    c_new = f * c + i * g
    h_new = o * jnp.tanh(c_new)
    return h_new, c_new


def _discriminator_kernel(
    x_ref,                            # (S*B, D) time-major, flattened
    w_ih0_ref, w_hh0_ref, b0_ref,     # layer-0 LSTMCell params (rnn1)
    w_ih1_ref, w_hh1_ref, b1_ref,     # layer-1 LSTMCell params (rnn2[0])
    lin_w_ref, lin_b_ref,             # final Linear(H, 1): (1, H) row, (1, 1)
    out_ref, logit_ref, feat_ref,     # outputs: sigmoid(logit), logit, feature
    *, hidden, seq_len, batch,
):
    H, S, B = hidden, seq_len, batch

    # Hoisted non-recurrent layer-0 input projection: one batched matmul over
    # all S*B rows instead of S serial MXU pushes on the critical path.
    gates_in0 = (
        jnp.dot(x_ref[...], w_ih0_ref[...], preferred_element_type=jnp.float32)
        + b0_ref[...]
    )                                                        # (S*B, 4H)

    w_hh0 = w_hh0_ref[...]
    w_ih1 = w_ih1_ref[...]
    w_hh1 = w_hh1_ref[...]
    b1 = b1_ref[...]

    # Lane mask selecting the tanh ('g') gate block -- hoisted, computed once.
    col = lax.broadcasted_iota(jnp.int32, (B, 4 * H), 1)
    is_g = jnp.logical_and(col >= 2 * H, col < 3 * H)

    h0 = jnp.zeros((B, H), jnp.float32)
    c0 = jnp.zeros((B, H), jnp.float32)
    h1 = jnp.zeros((B, H), jnp.float32)
    c1 = jnp.zeros((B, H), jnp.float32)

    # Fully unrolled time recurrence (S is small and static).  Carries stay in
    # vregs; only the recurrent h @ W_hh matmuls sit on the serial chain.
    for t in range(S):
        # layer 0 (rnn1): input = [input_t, cond_t] (already projected above)
        g0 = gates_in0[t * B:(t + 1) * B, :] + jnp.dot(
            h0, w_hh0, preferred_element_type=jnp.float32)
        h0, c0 = _lstm_activation(g0, c0, is_g)

        # layer 1 (rnn2[0]): input = h of layer 0
        g1 = (jnp.dot(h0, w_ih1, preferred_element_type=jnp.float32)
              + jnp.dot(h1, w_hh1, preferred_element_type=jnp.float32)
              + b1)
        h1, c1 = _lstm_activation(g1, c1, is_g)

    # Final Linear(H, 1) as VPU multiply + lane reduce (avoids an N=1 MXU push).
    logit = jnp.sum(h1 * lin_w_ref[...], axis=-1, keepdims=True) + lin_b_ref[...]
    out_ref[...] = jax.nn.sigmoid(logit)
    logit_ref[...] = logit
    feat_ref[...] = h1


def discriminator_forward(inp, cond, params, *, hidden):
    """inp: (B, S, input_size), cond: (B, S, cond_size)."""
    B, S, _ = inp.shape
    H = hidden

    # Layout glue in plain JAX: concat features, go time-major, flatten (S,B).
    x = jnp.concatenate([inp, cond], axis=-1).astype(jnp.float32)   # (B, S, D)
    x = jnp.transpose(x, (1, 0, 2)).reshape(S * B, -1)              # (S*B, D)
    lin_w_row = jnp.transpose(params["lin_w"])                      # (1, H)

    kernel = functools.partial(
        _discriminator_kernel, hidden=H, seq_len=S, batch=B)

    vmem = lambda: pl.BlockSpec(memory_space=pltpu.MemorySpace.VMEM)

    out, logit, feat = pl.pallas_call(
        kernel,
        out_shape=(
            jax.ShapeDtypeStruct((B, 1), jnp.float32),   # output = sigmoid(logit)
            jax.ShapeDtypeStruct((B, 1), jnp.float32),   # logit
            jax.ShapeDtypeStruct((B, H), jnp.float32),   # feature = h of last layer
        ),
        in_specs=[vmem() for _ in range(9)],
        out_specs=(vmem(), vmem(), vmem()),
    )(
        x,
        params["w_ih0"], params["w_hh0"], params["b0"],
        params["w_ih1"], params["w_hh1"], params["b1"],
        lin_w_row, params["lin_b"],
    )
    return out, logit, feat


# --------------------------------------------------------------------------
# Pure-JAX reference (matches the PyTorch forward for cell='lstm', layers=2)
# --------------------------------------------------------------------------
def _lstm_cell_step_ref(x, h, c, w_ih, w_hh, b, hidden):
    hp = jax.lax.Precision.HIGHEST
    gates = (jnp.dot(x, w_ih, precision=hp)
             + jnp.dot(h, w_hh, precision=hp)
             + b)
    i = jax.nn.sigmoid(gates[:, 0 * hidden:1 * hidden])
    f = jax.nn.sigmoid(gates[:, 1 * hidden:2 * hidden])
    g = jnp.tanh(gates[:, 2 * hidden:3 * hidden])
    o = jax.nn.sigmoid(gates[:, 3 * hidden:4 * hidden])
    c_new = f * c + i * g
    h_new = o * jnp.tanh(c_new)
    return h_new, c_new


def reference_forward(inp, cond, params, *, hidden):
    B, S, _ = inp.shape
    x = jnp.concatenate([inp, cond], axis=-1).astype(jnp.float32)
    h0 = jnp.zeros((B, hidden), jnp.float32)
    c0 = jnp.zeros((B, hidden), jnp.float32)
    h1 = jnp.zeros((B, hidden), jnp.float32)
    c1 = jnp.zeros((B, hidden), jnp.float32)
    for t in range(S):
        h0, c0 = _lstm_cell_step_ref(x[:, t, :], h0, c0,
                                     params["w_ih0"], params["w_hh0"],
                                     params["b0"], hidden)
        h1, c1 = _lstm_cell_step_ref(h0, h1, c1,
                                     params["w_ih1"], params["w_hh1"],
                                     params["b1"], hidden)
    logit = h1 @ params["lin_w"] + params["lin_b"]
    return jax.nn.sigmoid(logit), logit, h1


def init_params(key, input_size, cond_size, hidden):
    """Deterministic init mimicking PyTorch's uniform(-1/sqrt(H), 1/sqrt(H))."""
    D = input_size + cond_size
    H = hidden
    bound = 1.0 / jnp.sqrt(jnp.float32(H))
    ks = jax.random.split(key, 10)
    u = lambda k, shape: jax.random.uniform(
        k, shape, jnp.float32, minval=-bound, maxval=bound)
    return {
        # stored pre-transposed: x @ w_ih, h @ w_hh
        "w_ih0": u(ks[0], (D, 4 * H)),
        "w_hh0": u(ks[1], (H, 4 * H)),
        "b0":    u(ks[2], (1, 4 * H)) + u(ks[3], (1, 4 * H)),  # b_ih + b_hh
        "w_ih1": u(ks[4], (H, 4 * H)),
        "w_hh1": u(ks[5], (H, 4 * H)),
        "b1":    u(ks[6], (1, 4 * H)) + u(ks[7], (1, 4 * H)),
        "lin_w": u(ks[8], (H, 1)),
        "lin_b": u(ks[9], (1, 1)),
    }


if __name__ == "__main__":
    # Small shapes consistent with the module: batch=2, seq=8,
    # input_size=4, cond_size=2, hidden_size=32, layers=2, cell='lstm'.
    B, S, INPUT, COND, HIDDEN = 2, 8, 4, 2, 32

    key = jax.random.PRNGKey(0)
    k_inp, k_cond, k_params = jax.random.split(key, 3)
    inp = jax.random.normal(k_inp, (B, S, INPUT), dtype=jnp.float32)
    cond = jax.random.normal(k_cond, (B, S, COND), dtype=jnp.float32)
    params = init_params(k_params, INPUT, COND, HIDDEN)

    out, logit, feat = discriminator_forward(inp, cond, params, hidden=HIDDEN)
    jax.block_until_ready((out, logit, feat))

    ref_out, ref_logit, ref_feat = reference_forward(inp, cond, params, hidden=HIDDEN)
    assert jnp.allclose(out, ref_out, atol=2e-5, rtol=2e-5)
    assert jnp.allclose(logit, ref_logit, atol=2e-5, rtol=2e-5)
    assert jnp.allclose(feat, ref_feat, atol=2e-5, rtol=2e-5)

    print("KERNEL_OK")
</pallas_src>

<mosaic_0001>
module attributes {stable_mosaic.version = 11 : i64} {
  func.func @_discriminator_kernel(%arg0: memref<16x6xf32, #tpu.memory_space<vmem>>, %arg1: memref<6x128xf32, #tpu.memory_space<vmem>>, %arg2: memref<32x128xf32, #tpu.memory_space<vmem>>, %arg3: memref<1x128xf32, #tpu.memory_space<vmem>>, %arg4: memref<32x128xf32, #tpu.memory_space<vmem>>, %arg5: memref<32x128xf32, #tpu.memory_space<vmem>>, %arg6: memref<1x128xf32, #tpu.memory_space<vmem>>, %arg7: memref<1x32xf32, #tpu.memory_space<vmem>>, %arg8: memref<1x1xf32, #tpu.memory_space<vmem>>, %arg9: memref<2x1xf32, #tpu.memory_space<vmem>>, %arg10: memref<2x1xf32, #tpu.memory_space<vmem>>, %arg11: memref<2x32xf32, #tpu.memory_space<vmem>>) attributes {dimension_semantics = [], scalar_prefetch = 0 : i64, scratch_operands = 0 : i64, tpu.core_type = #tpu.core_type<tc>} {
    %c0 = arith.constant 0 : index
    %c0_0 = arith.constant 0 : index
    %0 = vector.load %arg0[%c0, %c0_0] : memref<16x6xf32, #tpu.memory_space<vmem>>, vector<16x6xf32>
    %c0_1 = arith.constant 0 : index
    %c0_2 = arith.constant 0 : index
    %1 = vector.load %arg1[%c0_1, %c0_2] : memref<6x128xf32, #tpu.memory_space<vmem>>, vector<6x128xf32>
    %cst = arith.constant dense<0.000000e+00> : vector<16x128xf32>
    %2 = tpu.matmul %0, %1, %cst {dimension_numbers = #tpu.dot_dimension_numbers<[1], [0], [0], [1], [0, 0, 1, 1], [], []>} : vector<16x6xf32>, vector<6x128xf32>, vector<16x128xf32> -> vector<16x128xf32>
    %c0_3 = arith.constant 0 : index
    %c0_4 = arith.constant 0 : index
    %3 = vector.load %arg3[%c0_3, %c0_4] : memref<1x128xf32, #tpu.memory_space<vmem>>, vector<1x128xf32>
    %4 = vector.broadcast %3 : vector<1x128xf32> to vector<16x128xf32>
    %5 = arith.addf %2, %4 : vector<16x128xf32>
    %c0_5 = arith.constant 0 : index
    %c0_6 = arith.constant 0 : index
    %6 = vector.load %arg2[%c0_5, %c0_6] : memref<32x128xf32, #tpu.memory_space<vmem>>, vector<32x128xf32>
    %c0_7 = arith.constant 0 : index
    %c0_8 = arith.constant 0 : index
    %7 = vector.load %arg4[%c0_7, %c0_8] : memref<32x128xf32, #tpu.memory_space<vmem>>, vector<32x128xf32>
    %c0_9 = arith.constant 0 : index
    %c0_10 = arith.constant 0 : index
    %8 = vector.load %arg5[%c0_9, %c0_10] : memref<32x128xf32, #tpu.memory_space<vmem>>, vector<32x128xf32>
    %c0_11 = arith.constant 0 : index
    %c0_12 = arith.constant 0 : index
    %9 = vector.load %arg6[%c0_11, %c0_12] : memref<1x128xf32, #tpu.memory_space<vmem>>, vector<1x128xf32>
    %10 = tpu.iota {dimensions = array<i32: 1>} : vector<2x128xi32>
    %c64_i32 = arith.constant 64 : i32
    %11 = vector.broadcast %c64_i32 : i32 to vector<2x128xi32>
    %12 = arith.cmpi sge, %10, %11 : vector<2x128xi32>
    %c96_i32 = arith.constant 96 : i32
    %13 = vector.broadcast %c96_i32 : i32 to vector<2x128xi32>
    %14 = arith.cmpi slt, %10, %13 : vector<2x128xi32>
    %15 = arith.andi %12, %14 : vector<2x128xi1>
    %cst_13 = arith.constant 0.000000e+00 : f32
    %16 = vector.broadcast %cst_13 : f32 to vector<2x32xf32>
    %cst_14 = arith.constant 0.000000e+00 : f32
    %17 = vector.broadcast %cst_14 : f32 to vector<2x32xf32>
    %cst_15 = arith.constant 0.000000e+00 : f32
    %18 = vector.broadcast %cst_15 : f32 to vector<2x32xf32>
    %cst_16 = arith.constant 0.000000e+00 : f32
    %19 = vector.broadcast %cst_16 : f32 to vector<2x32xf32>
    %20 = vector.extract_strided_slice %5 {offsets = [0, 0], sizes = [2, 128], strides = [1, 1]} : vector<16x128xf32> to vector<2x128xf32>
    %cst_17 = arith.constant dense<0.000000e+00> : vector<2x128xf32>
    %21 = tpu.matmul %16, %6, %cst_17 {dimension_numbers = #tpu.dot_dimension_numbers<[1], [0], [0], [1], [0, 0, 1, 1], [], []>} : vector<2x32xf32>, vector<32x128xf32>, vector<2x128xf32> -> vector<2x128xf32>
    %22 = arith.addf %20, %21 : vector<2x128xf32>
    %23 = math.tanh %22 : vector<2x128xf32>
    %24 = arith.negf %22 : vector<2x128xf32>
    %25 = math.exp %24 : vector<2x128xf32>
    %cst_18 = arith.constant 1.000000e+00 : f32
    %26 = vector.broadcast %cst_18 : f32 to vector<2x128xf32>
    %27 = arith.addf %26, %25 : vector<2x128xf32>
    %28 = arith.divf %26, %27 : vector<2x128xf32>
    %29 = arith.select %15, %23, %28 : vector<2x128xi1>, vector<2x128xf32>
    %30 = vector.extract_strided_slice %29 {offsets = [0, 0], sizes = [2, 32], strides = [1, 1]} : vector<2x128xf32> to vector<2x32xf32>
    %31 = vector.extract_strided_slice %29 {offsets = [0, 32], sizes = [2, 32], strides = [1, 1]} : vector<2x128xf32> to vector<2x32xf32>
    %32 = vector.extract_strided_slice %29 {offsets = [0, 64], sizes = [2, 32], strides = [1, 1]} : vector<2x128xf32> to vector<2x32xf32>
    %33 = vector.extract_strided_slice %29 {offsets = [0, 96], sizes = [2, 32], strides = [1, 1]} : vector<2x128xf32> to vector<2x32xf32>
    %34 = arith.mulf %31, %17 : vector<2x32xf32>
    %35 = arith.mulf %30, %32 : vector<2x32xf32>
    %36 = arith.addf %34, %35 : vector<2x32xf32>
    %37 = math.tanh %36 : vector<2x32xf32>
    %38 = arith.mulf %33, %37 : vector<2x32xf32>
    %cst_19 = arith.constant dense<0.000000e+00> : vector<2x128xf32>
    %39 = tpu.matmul %38, %7, %cst_19 {dimension_numbers = #tpu.dot_dimension_numbers<[1], [0], [0], [1], [0, 0, 1, 1], [], []>} : vector<2x32xf32>, vector<32x128xf32>, vector<2x128xf32> -> vector<2x128xf32>
    %cst_20 = arith.constant dense<0.000000e+00> : vector<2x128xf32>
    %40 = tpu.matmul %18, %8, %cst_20 {dimension_numbers = #tpu.dot_dimension_numbers<[1], [0], [0], [1], [0, 0, 1, 1], [], []>} : vector<2x32xf32>, vector<32x128xf32>, vector<2x128xf32> -> vector<2x128xf32>
    %41 = arith.addf %39, %40 : vector<2x128xf32>
    %42 = vector.broadcast %9 : vector<1x128xf32> to vector<2x128xf32>
    %43 = arith.addf %41, %42 : vector<2x128xf32>
    %44 = math.tanh %43 : vector<2x128xf32>
    %45 = arith.negf %43 : vector<2x128xf32>
    %46 = math.exp %45 : vector<2x128xf32>
    %cst_21 = arith.constant 1.000000e+00 : f32
    %47 = vector.broadcast %cst_21 : f32 to vector<2x128xf32>
    %48 = arith.addf %47, %46 : vector<2x128xf32>
    %49 = arith.divf %47, %48 : vector<2x128xf32>
    %50 = arith.select %15, %44, %49 : vector<2x128xi1>, vector<2x128xf32>
    %51 = vector.extract_strided_slice %50 {offsets = [0, 0], sizes = [2, 32], strides = [1, 1]} : vector<2x128xf32> to vector<2x32xf32>
    %52 = vector.extract_strided_slice %50 {offsets = [0, 32], sizes = [2, 32], strides = [1, 1]} : vector<2x128xf32> to vector<2x32xf32>
    %53 = vector.extract_strided_slice %50 {offsets = [0, 64], sizes = [2, 32], strides = [1, 1]} : vector<2x128xf32> to vector<2x32xf32>
    %54 = vector.extract_strided_slice %50 {offsets = [0, 96], sizes = [2, 32], strides = [1, 1]} : vector<2x128xf32> to vector<2x32xf32>
    %55 = arith.mulf %52, %19 : vector<2x32xf32>
    %56 = arith.mulf %51, %53 : vector<2x32xf32>
    %57 = arith.addf %55, %56 : vector<2x32xf32>
    %58 = math.tanh %57 : vector<2x32xf32>
    %59 = arith.mulf %54, %58 : vector<2x32xf32>
    %60 = vector.extract_strided_slice %5 {offsets = [2, 0], sizes = [2, 128], strides = [1, 1]} : vector<16x128xf32> to vector<2x128xf32>
    %cst_22 = arith.constant dense<0.000000e+00> : vector<2x128xf32>
    %61 = tpu.matmul %38, %6, %cst_22 {dimension_numbers = #tpu.dot_dimension_numbers<[1], [0], [0], [1], [0, 0, 1, 1], [], []>} : vector<2x32xf32>, vector<32x128xf32>, vector<2x128xf32> -> vector<2x128xf32>
    %62 = arith.addf %60, %61 : vector<2x128xf32>
    %63 = math.tanh %62 : vector<2x128xf32>
    %64 = arith.negf %62 : vector<2x128xf32>
    %65 = math.exp %64 : vector<2x128xf32>
    %cst_23 = arith.constant 1.000000e+00 : f32
    %66 = vector.broadcast %cst_23 : f32 to vector<2x128xf32>
    %67 = arith.addf %66, %65 : vector<2x128xf32>
    %68 = arith.divf %66, %67 : vector<2x128xf32>
    %69 = arith.select %15, %63, %68 : vector<2x128xi1>, vector<2x128xf32>
    %70 = vector.extract_strided_slice %69 {offsets = [0, 0], sizes = [2, 32], strides = [1, 1]} : vector<2x128xf32> to vector<2x32xf32>
    %71 = vector.extract_strided_slice %69 {offsets = [0, 32], sizes = [2, 32], strides = [1, 1]} : vector<2x128xf32> to vector<2x32xf32>
    %72 = vector.extract_strided_slice %69 {offsets = [0, 64], sizes = [2, 32], strides = [1, 1]} : vector<2x128xf32> to vector<2x32xf32>
    %73 = vector.extract_strided_slice %69 {offsets = [0, 96], sizes = [2, 32], strides = [1, 1]} : vector<2x128xf32> to vector<2x32xf32>
    %74 = arith.mulf %71, %36 : vector<2x32xf32>
    %75 = arith.mulf %70, %72 : vector<2x32xf32>
    %76 = arith.addf %74, %75 : vector<2x32xf32>
    %77 = math.tanh %76 : vector<2x32xf32>
    %78 = arith.mulf %73, %77 : vector<2x32xf32>
    %cst_24 = arith.constant dense<0.000000e+00> : vector<2x128xf32>
    %79 = tpu.matmul %78, %7, %cst_24 {dimension_numbers = #tpu.dot_dimension_numbers<[1], [0], [0], [1], [0, 0, 1, 1], [], []>} : vector<2x32xf32>, vector<32x128xf32>, vector<2x128xf32> -> vector<2x128xf32>
    %cst_25 = arith.constant dense<0.000000e+00> : vector<2x128xf32>
    %80 = tpu.matmul %59, %8, %cst_25 {dimension_numbers = #tpu.dot_dimension_numbers<[1], [0], [0], [1], [0, 0, 1, 1], [], []>} : vector<2x32xf32>, vector<32x128xf32>, vector<2x128xf32> -> vector<2x128xf32>
    %81 = arith.addf %79, %80 : vector<2x128xf32>
    %82 = vector.broadcast %9 : vector<1x128xf32> to vector<2x128xf32>
    %83 = arith.addf %81, %82 : vector<2x128xf32>
    %84 = math.tanh %83 : vector<2x128xf32>
    %85 = arith.negf %83 : vector<2x128xf32>
    %86 = math.exp %85 : vector<2x128xf32>
    %cst_26 = arith.constant 1.000000e+00 : f32
    %87 = vector.broadcast %cst_26 : f32 to vector<2x128xf32>
    %88 = arith.addf %87, %86 : vector<2x128xf32>
    %89 = arith.divf %87, %88 : vector<2x128xf32>
    %90 = arith.select %15, %84, %89 : vector<2x128xi1>, vector<2x128xf32>
    %91 = vector.extract_strided_slice %90 {offsets = [0, 0], sizes = [2, 32], strides = [1, 1]} : vector<2x128xf32> to vector<2x32xf32>
    %92 = vector.extract_strided_slice %90 {offsets = [0, 32], sizes = [2, 32], strides = [1, 1]} : vector<2x128xf32> to vector<2x32xf32>
    %93 = vector.extract_strided_slice %90 {offsets = [0, 64], sizes = [2, 32], strides = [1, 1]} : vector<2x128xf32> to vector<2x32xf32>
    %94 = vector.extract_strided_slice %90 {offsets = [0, 96], sizes = [2, 32], strides = [1, 1]} : vector<2x128xf32> to vector<2x32xf32>
    %95 = arith.mulf %92, %57 : vector<2x32xf32>
    %96 = arith.mulf %91, %93 : vector<2x32xf32>
    %97 = arith.addf %95, %96 : vector<2x32xf32>
    %98 = math.tanh %97 : vector<2x32xf32>
    %99 = arith.mulf %94, %98 : vector<2x32xf32>
    %100 = vector.extract_strided_slice %5 {offsets = [4, 0], sizes = [2, 128], strides = [1, 1]} : vector<16x128xf32> to vector<2x128xf32>
    %cst_27 = arith.constant dense<0.000000e+00> : vector<2x128xf32>
    %101 = tpu.matmul %78, %6, %cst_27 {dimension_numbers = #tpu.dot_dimension_numbers<[1], [0], [0], [1], [0, 0, 1, 1], [], []>} : vector<2x32xf32>, vector<32x128xf32>, vector<2x128xf32> -> vector<2x128xf32>
    %102 = arith.addf %100, %101 : vector<2x128xf32>
    %103 = math.tanh %102 : vector<2x128xf32>
    %104 = arith.negf %102 : vector<2x128xf32>
    %105 = math.exp %104 : vector<2x128xf32>
    %cst_28 = arith.constant 1.000000e+00 : f32
    %106 = vector.broadcast %cst_28 : f32 to vector<2x128xf32>
    %107 = arith.addf %106, %105 : vector<2x128xf32>
    %108 = arith.divf %106, %107 : vector<2x128xf32>
    %109 = arith.select %15, %103, %108 : vector<2x128xi1>, vector<2x128xf32>
    %110 = vector.extract_strided_slice %109 {offsets = [0, 0], sizes = [2, 32], strides = [1, 1]} : vector<2x128xf32> to vector<2x32xf32>
    %111 = vector.extract_strided_slice %109 {offsets = [0, 32], sizes = [2, 32], strides = [1, 1]} : vector<2x128xf32> to vector<2x32xf32>
    %112 = vector.extract_strided_slice %109 {offsets = [0, 64], sizes = [2, 32], strides = [1, 1]} : vector<2x128xf32> to vector<2x32xf32>
    %113 = vector.extract_strided_slice %109 {offsets = [0, 96], sizes = [2, 32], strides = [1, 1]} : vector<2x128xf32> to vector<2x32xf32>
    %114 = arith.mulf %111, %76 : vector<2x32xf32>
    %115 = arith.mulf %110, %112 : vector<2x32xf32>
    %116 = arith.addf %114, %115 : vector<2x32xf32>
    %117 = math.tanh %116 : vector<2x32xf32>
    %118 = arith.mulf %113, %117 : vector<2x32xf32>
    %cst_29 = arith.constant dense<0.000000e+00> : vector<2x128xf32>
    %119 = tpu.matmul %118, %7, %cst_29 {dimension_numbers = #tpu.dot_dimension_numbers<[1], [0], [0], [1], [0, 0, 1, 1], [], []>} : vector<2x32xf32>, vector<32x128xf32>, vector<2x128xf32> -> vector<2x128xf32>
    %cst_30 = arith.constant dense<0.000000e+00> : vector<2x128xf32>
    %120 = tpu.matmul %99, %8, %cst_30 {dimension_numbers = #tpu.dot_dimension_numbers<[1], [0], [0], [1], [0, 0, 1, 1], [], []>} : vector<2x32xf32>, vector<32x128xf32>, vector<2x128xf32> -> vector<2x128xf32>
    %121 = arith.addf %119, %120 : vector<2x128xf32>
    %122 = vector.broadcast %9 : vector<1x128xf32> to vector<2x128xf32>
    %123 = arith.addf %121, %122 : vector<2x128xf32>
    %124 = math.tanh %123 : vector<2x128xf32>
    %125 = arith.negf %123 : vector<2x128xf32>
    %126 = math.exp %125 : vector<2x128xf32>
    %cst_31 = arith.constant 1.000000e+00 : f32
    %127 = vector.broadcast %cst_31 : f32 to vector<2x128xf32>
    %128 = arith.addf %127, %126 : vector<2x128xf32>
    %129 = arith.divf %127, %128 : vector<2x128xf32>
    %130 = arith.select %15, %124, %129 : vector<2x128xi1>, vector<2x128xf32>
    %131 = vector.extract_strided_slice %130 {offsets = [0, 0], sizes = [2, 32], strides = [1, 1]} : vector<2x128xf32> to vector<2x32xf32>
    %132 = vector.extract_strided_slice %130 {offsets = [0, 32], sizes = [2, 32], strides = [1, 1]} : vector<2x128xf32> to vector<2x32xf32>
    %133 = vector.extract_strided_slice %130 {offsets = [0, 64], sizes = [2, 32], strides = [1, 1]} : vector<2x128xf32> to vector<2x32xf32>
    %134 = vector.extract_strided_slice %130 {offsets = [0, 96], sizes = [2, 32], strides = [1, 1]} : vector<2x128xf32> to vector<2x32xf32>
    %135 = arith.mulf %132, %97 : vector<2x32xf32>
    %136 = arith.mulf %131, %133 : vector<2x32xf32>
    %137 = arith.addf %135, %136 : vector<2x32xf32>
    %138 = math.tanh %137 : vector<2x32xf32>
    %139 = arith.mulf %134, %138 : vector<2x32xf32>
    %140 = vector.extract_strided_slice %5 {offsets = [6, 0], sizes = [2, 128], strides = [1, 1]} : vector<16x128xf32> to vector<2x128xf32>
    %cst_32 = arith.constant dense<0.000000e+00> : vector<2x128xf32>
    %141 = tpu.matmul %118, %6, %cst_32 {dimension_numbers = #tpu.dot_dimension_numbers<[1], [0], [0], [1], [0, 0, 1, 1], [], []>} : vector<2x32xf32>, vector<32x128xf32>, vector<2x128xf32> -> vector<2x128xf32>
    %142 = arith.addf %140, %141 : vector<2x128xf32>
    %143 = math.tanh %142 : vector<2x128xf32>
    %144 = arith.negf %142 : vector<2x128xf32>
    %145 = math.exp %144 : vector<2x128xf32>
    %cst_33 = arith.constant 1.000000e+00 : f32
    %146 = vector.broadcast %cst_33 : f32 to vector<2x128xf32>
    %147 = arith.addf %146, %145 : vector<2x128xf32>
    %148 = arith.divf %146, %147 : vector<2x128xf32>
    %149 = arith.select %15, %143, %148 : vector<2x128xi1>, vector<2x128xf32>
    %150 = vector.extract_strided_slice %149 {offsets = [0, 0], sizes = [2, 32], strides = [1, 1]} : vector<2x128xf32> to vector<2x32xf32>
    %151 = vector.extract_strided_slice %149 {offsets = [0, 32], sizes = [2, 32], strides = [1, 1]} : vector<2x128xf32> to vector<2x32xf32>
    %152 = vector.extract_strided_slice %149 {offsets = [0, 64], sizes = [2, 32], strides = [1, 1]} : vector<2x128xf32> to vector<2x32xf32>
    %153 = vector.extract_strided_slice %149 {offsets = [0, 96], sizes = [2, 32], strides = [1, 1]} : vector<2x128xf32> to vector<2x32xf32>
    %154 = arith.mulf %151, %116 : vector<2x32xf32>
    %155 = arith.mulf %150, %152 : vector<2x32xf32>
    %156 = arith.addf %154, %155 : vector<2x32xf32>
    %157 = math.tanh %156 : vector<2x32xf32>
    %158 = arith.mulf %153, %157 : vector<2x32xf32>
    %cst_34 = arith.constant dense<0.000000e+00> : vector<2x128xf32>
    %159 = tpu.matmul %158, %7, %cst_34 {dimension_numbers = #tpu.dot_dimension_numbers<[1], [0], [0], [1], [0, 0, 1, 1], [], []>} : vector<2x32xf32>, vector<32x128xf32>, vector<2x128xf32> -> vector<2x128xf32>
    %cst_35 = arith.constant dense<0.000000e+00> : vector<2x128xf32>
    %160 = tpu.matmul %139, %8, %cst_35 {dimension_numbers = #tpu.dot_dimension_numbers<[1], [0], [0], [1], [0, 0, 1, 1], [], []>} : vector<2x32xf32>, vector<32x128xf32>, vector<2x128xf32> -> vector<2x128xf32>
    %161 = arith.addf %159, %160 : vector<2x128xf32>
    %162 = vector.broadcast %9 : vector<1x128xf32> to vector<2x128xf32>
    %163 = arith.addf %161, %162 : vector<2x128xf32>
    %164 = math.tanh %163 : vector<2x128xf32>
    %165 = arith.negf %163 : vector<2x128xf32>
    %166 = math.exp %165 : vector<2x128xf32>
    %cst_36 = arith.constant 1.000000e+00 : f32
    %167 = vector.broadcast %cst_36 : f32 to vector<2x128xf32>
    %168 = arith.addf %167, %166 : vector<2x128xf32>
    %169 = arith.divf %167, %168 : vector<2x128xf32>
    %170 = arith.select %15, %164, %169 : vector<2x128xi1>, vector<2x128xf32>
    %171 = vector.extract_strided_slice %170 {offsets = [0, 0], sizes = [2, 32], strides = [1, 1]} : vector<2x128xf32> to vector<2x32xf32>
    %172 = vector.extract_strided_slice %170 {offsets = [0, 32], sizes = [2, 32], strides = [1, 1]} : vector<2x128xf32> to vector<2x32xf32>
    %173 = vector.extract_strided_slice %170 {offsets = [0, 64], sizes = [2, 32], strides = [1, 1]} : vector<2x128xf32> to vector<2x32xf32>
    %174 = vector.extract_strided_slice %170 {offsets = [0, 96], sizes = [2, 32], strides = [1, 1]} : vector<2x128xf32> to vector<2x32xf32>
    %175 = arith.mulf %172, %137 : vector<2x32xf32>
    %176 = arith.mulf %171, %173 : vector<2x32xf32>
    %177 = arith.addf %175, %176 : vector<2x32xf32>
    %178 = math.tanh %177 : vector<2x32xf32>
    %179 = arith.mulf %174, %178 : vector<2x32xf32>
    %180 = vector.extract_strided_slice %5 {offsets = [8, 0], sizes = [2, 128], strides = [1, 1]} : vector<16x128xf32> to vector<2x128xf32>
    %cst_37 = arith.constant dense<0.000000e+00> : vector<2x128xf32>
    %181 = tpu.matmul %158, %6, %cst_37 {dimension_numbers = #tpu.dot_dimension_numbers<[1], [0], [0], [1], [0, 0, 1, 1], [], []>} : vector<2x32xf32>, vector<32x128xf32>, vector<2x128xf32> -> vector<2x128xf32>
    %182 = arith.addf %180, %181 : vector<2x128xf32>
    %183 = math.tanh %182 : vector<2x128xf32>
    %184 = arith.negf %182 : vector<2x128xf32>
    %185 = math.exp %184 : vector<2x128xf32>
    %cst_38 = arith.constant 1.000000e+00 : f32
    %186 = vector.broadcast %cst_38 : f32 to vector<2x128xf32>
    %187 = arith.addf %186, %185 : vector<2x128xf32>
    %188 = arith.divf %186, %187 : vector<2x128xf32>
    %189 = arith.select %15, %183, %188 : vector<2x128xi1>, vector<2x128xf32>
    %190 = vector.extract_strided_slice %189 {offsets = [0, 0], sizes = [2, 32], strides = [1, 1]} : vector<2x128xf32> to vector<2x32xf32>
    %191 = vector.extract_strided_slice %189 {offsets = [0, 32], sizes = [2, 32], strides = [1, 1]} : vector<2x128xf32> to vector<2x32xf32>
    %192 = vector.extract_strided_slice %189 {offsets = [0, 64], sizes = [2, 32], strides = [1, 1]} : vector<2x128xf32> to vector<2x32xf32>
    %193 = vector.extract_strided_slice %189 {offsets = [0, 96], sizes = [2, 32], strides = [1, 1]} : vector<2x128xf32> to vector<2x32xf32>
    %194 = arith.mulf %191, %156 : vector<2x32xf32>
    %195 = arith.mulf %190, %192 : vector<2x32xf32>
    %196 = arith.addf %194, %195 : vector<2x32xf32>
    %197 = math.tanh %196 : vector<2x32xf32>
    %198 = arith.mulf %193, %197 : vector<2x32xf32>
    %cst_39 = arith.constant dense<0.000000e+00> : vector<2x128xf32>
    %199 = tpu.matmul %198, %7, %cst_39 {dimension_numbers = #tpu.dot_dimension_numbers<[1], [0], [0], [1], [0, 0, 1, 1], [], []>} : vector<2x32xf32>, vector<32x128xf32>, vector<2x128xf32> -> vector<2x128xf32>
    %cst_40 = arith.constant dense<0.000000e+00> : vector<2x128xf32>
    %200 = tpu.matmul %179, %8, %cst_40 {dimension_numbers = #tpu.dot_dimension_numbers<[1], [0], [0], [1], [0, 0, 1, 1], [], []>} : vector<2x32xf32>, vector<32x128xf32>, vector<2x128xf32> -> vector<2x128xf32>
    %201 = arith.addf %199, %200 : vector<2x128xf32>
    %202 = vector.broadcast %9 : vector<1x128xf32> to vector<2x128xf32>
    %203 = arith.addf %201, %202 : vector<2x128xf32>
    %204 = math.tanh %203 : vector<2x128xf32>
    %205 = arith.negf %203 : vector<2x128xf32>
    %206 = math.exp %205 : vector<2x128xf32>
    %cst_41 = arith.constant 1.000000e+00 : f32
    %207 = vector.broadcast %cst_41 : f32 to vector<2x128xf32>
    %208 = arith.addf %207, %206 : vector<2x128xf32>
    %209 = arith.divf %207, %208 : vector<2x128xf32>
    %210 = arith.select %15, %204, %209 : vector<2x128xi1>, vector<2x128xf32>
    %211 = vector.extract_strided_slice %210 {offsets = [0, 0], sizes = [2, 32], strides = [1, 1]} : vector<2x128xf32> to vector<2x32xf32>
    %212 = vector.extract_strided_slice %210 {offsets = [0, 32], sizes = [2, 32], strides = [1, 1]} : vector<2x128xf32> to vector<2x32xf32>
    %213 = vector.extract_strided_slice %210 {offsets = [0, 64], sizes = [2, 32], strides = [1, 1]} : vector<2x128xf32> to vector<2x32xf32>
    %214 = vector.extract_strided_slice %210 {offsets = [0, 96], sizes = [2, 32], strides = [1, 1]} : vector<2x128xf32> to vector<2x32xf32>
    %215 = arith.mulf %212, %177 : vector<2x32xf32>
    %216 = arith.mulf %211, %213 : vector<2x32xf32>
    %217 = arith.addf %215, %216 : vector<2x32xf32>
    %218 = math.tanh %217 : vector<2x32xf32>
    %219 = arith.mulf %214, %218 : vector<2x32xf32>
    %220 = vector.extract_strided_slice %5 {offsets = [10, 0], sizes = [2, 128], strides = [1, 1]} : vector<16x128xf32> to vector<2x128xf32>
    %cst_42 = arith.constant dense<0.000000e+00> : vector<2x128xf32>
    %221 = tpu.matmul %198, %6, %cst_42 {dimension_numbers = #tpu.dot_dimension_numbers<[1], [0], [0], [1], [0, 0, 1, 1], [], []>} : vector<2x32xf32>, vector<32x128xf32>, vector<2x128xf32> -> vector<2x128xf32>
    %222 = arith.addf %220, %221 : vector<2x128xf32>
    %223 = math.tanh %222 : vector<2x128xf32>
    %224 = arith.negf %222 : vector<2x128xf32>
    %225 = math.exp %224 : vector<2x128xf32>
    %cst_43 = arith.constant 1.000000e+00 : f32
    %226 = vector.broadcast %cst_43 : f32 to vector<2x128xf32>
    %227 = arith.addf %226, %225 : vector<2x128xf32>
    %228 = arith.divf %226, %227 : vector<2x128xf32>
    %229 = arith.select %15, %223, %228 : vector<2x128xi1>, vector<2x128xf32>
    %230 = vector.extract_strided_slice %229 {offsets = [0, 0], sizes = [2, 32], strides = [1, 1]} : vector<2x128xf32> to vector<2x32xf32>
    %231 = vector.extract_strided_slice %229 {offsets = [0, 32], sizes = [2, 32], strides = [1, 1]} : vector<2x128xf32> to vector<2x32xf32>
    %232 = vector.extract_strided_slice %229 {offsets = [0, 64], sizes = [2, 32], strides = [1, 1]} : vector<2x128xf32> to vector<2x32xf32>
    %233 = vector.extract_strided_slice %229 {offsets = [0, 96], sizes = [2, 32], strides = [1, 1]} : vector<2x128xf32> to vector<2x32xf32>
    %234 = arith.mulf %231, %196 : vector<2x32xf32>
    %235 = arith.mulf %230, %232 : vector<2x32xf32>
    %236 = arith.addf %234, %235 : vector<2x32xf32>
    %237 = math.tanh %236 : vector<2x32xf32>
    %238 = arith.mulf %233, %237 : vector<2x32xf32>
    %cst_44 = arith.constant dense<0.000000e+00> : vector<2x128xf32>
    %239 = tpu.matmul %238, %7, %cst_44 {dimension_numbers = #tpu.dot_dimension_numbers<[1], [0], [0], [1], [0, 0, 1, 1], [], []>} : vector<2x32xf32>, vector<32x128xf32>, vector<2x128xf32> -> vector<2x128xf32>
    %cst_45 = arith.constant dense<0.000000e+00> : vector<2x128xf32>
    %240 = tpu.matmul %219, %8, %cst_45 {dimension_numbers = #tpu.dot_dimension_numbers<[1], [0], [0], [1], [0, 0, 1, 1], [], []>} : vector<2x32xf32>, vector<32x128xf32>, vector<2x128xf32> -> vector<2x128xf32>
    %241 = arith.addf %239, %240 : vector<2x128xf32>
    %242 = vector.broadcast %9 : vector<1x128xf32> to vector<2x128xf32>
    %243 = arith.addf %241, %242 : vector<2x128xf32>
    %244 = math.tanh %243 : vector<2x128xf32>
    %245 = arith.negf %243 : vector<2x128xf32>
    %246 = math.exp %245 : vector<2x128xf32>
    %cst_46 = arith.constant 1.000000e+00 : f32
    %247 = vector.broadcast %cst_46 : f32 to vector<2x128xf32>
    %248 = arith.addf %247, %246 : vector<2x128xf32>
    %249 = arith.divf %247, %248 : vector<2x128xf32>
    %250 = arith.select %15, %244, %249 : vector<2x128xi1>, vector<2x128xf32>
    %251 = vector.extract_strided_slice %250 {offsets = [0, 0], sizes = [2, 32], strides = [1, 1]} : vector<2x128xf32> to vector<2x32xf32>
    %252 = vector.extract_strided_slice %250 {offsets = [0, 32], sizes = [2, 32], strides = [1, 1]} : vector<2x128xf32> to vector<2x32xf32>
    %253 = vector.extract_strided_slice %250 {offsets = [0, 64], sizes = [2, 32], strides = [1, 1]} : vector<2x128xf32> to vector<2x32xf32>
    %254 = vector.extract_strided_slice %250 {offsets = [0, 96], sizes = [2, 32], strides = [1, 1]} : vector<2x128xf32> to vector<2x32xf32>
    %255 = arith.mulf %252, %217 : vector<2x32xf32>
    %256 = arith.mulf %251, %253 : vector<2x32xf32>
    %257 = arith.addf %255, %256 : vector<2x32xf32>
    %258 = math.tanh %257 : vector<2x32xf32>
    %259 = arith.mulf %254, %258 : vector<2x32xf32>
    %260 = vector.extract_strided_slice %5 {offsets = [12, 0], sizes = [2, 128], strides = [1, 1]} : vector<16x128xf32> to vector<2x128xf32>
    %cst_47 = arith.constant dense<0.000000e+00> : vector<2x128xf32>
    %261 = tpu.matmul %238, %6, %cst_47 {dimension_numbers = #tpu.dot_dimension_numbers<[1], [0], [0], [1], [0, 0, 1, 1], [], []>} : vector<2x32xf32>, vector<32x128xf32>, vector<2x128xf32> -> vector<2x128xf32>
    %262 = arith.addf %260, %261 : vector<2x128xf32>
    %263 = math.tanh %262 : vector<2x128xf32>
    %264 = arith.negf %262 : vector<2x128xf32>
    %265 = math.exp %264 : vector<2x128xf32>
    %cst_48 = arith.constant 1.000000e+00 : f32
    %266 = vector.broadcast %cst_48 : f32 to vector<2x128xf32>
    %267 = arith.addf %266, %265 : vector<2x128xf32>
    %268 = arith.divf %266, %267 : vector<2x128xf32>
    %269 = arith.select %15, %263, %268 : vector<2x128xi1>, vector<2x128xf32>
    %270 = vector.extract_strided_slice %269 {offsets = [0, 0], sizes = [2, 32], strides = [1, 1]} : vector<2x128xf32> to vector<2x32xf32>
    %271 = vector.extract_strided_slice %269 {offsets = [0, 32], sizes = [2, 32], strides = [1, 1]} : vector<2x128xf32> to vector<2x32xf32>
    %272 = vector.extract_strided_slice %269 {offsets = [0, 64], sizes = [2, 32], strides = [1, 1]} : vector<2x128xf32> to vector<2x32xf32>
    %273 = vector.extract_strided_slice %269 {offsets = [0, 96], sizes = [2, 32], strides = [1, 1]} : vector<2x128xf32> to vector<2x32xf32>
    %274 = arith.mulf %271, %236 : vector<2x32xf32>
    %275 = arith.mulf %270, %272 : vector<2x32xf32>
    %276 = arith.addf %274, %275 : vector<2x32xf32>
    %277 = math.tanh %276 : vector<2x32xf32>
    %278 = arith.mulf %273, %277 : vector<2x32xf32>
    %cst_49 = arith.constant dense<0.000000e+00> : vector<2x128xf32>
    %279 = tpu.matmul %278, %7, %cst_49 {dimension_numbers = #tpu.dot_dimension_numbers<[1], [0], [0], [1], [0, 0, 1, 1], [], []>} : vector<2x32xf32>, vector<32x128xf32>, vector<2x128xf32> -> vector<2x128xf32>
    %cst_50 = arith.constant dense<0.000000e+00> : vector<2x128xf32>
    %280 = tpu.matmul %259, %8, %cst_50 {dimension_numbers = #tpu.dot_dimension_numbers<[1], [0], [0], [1], [0, 0, 1, 1], [], []>} : vector<2x32xf32>, vector<32x128xf32>, vector<2x128xf32> -> vector<2x128xf32>
    %281 = arith.addf %279, %280 : vector<2x128xf32>
    %282 = vector.broadcast %9 : vector<1x128xf32> to vector<2x128xf32>
    %283 = arith.addf %281, %282 : vector<2x128xf32>
    %284 = math.tanh %283 : vector<2x128xf32>
    %285 = arith.negf %283 : vector<2x128xf32>
    %286 = math.exp %285 : vector<2x128xf32>
    %cst_51 = arith.constant 1.000000e+00 : f32
    %287 = vector.broadcast %cst_51 : f32 to vector<2x128xf32>
    %288 = arith.addf %287, %286 : vector<2x128xf32>
    %289 = arith.divf %287, %288 : vector<2x128xf32>
    %290 = arith.select %15, %284, %289 : vector<2x128xi1>, vector<2x128xf32>
    %291 = vector.extract_strided_slice %290 {offsets = [0, 0], sizes = [2, 32], strides = [1, 1]} : vector<2x128xf32> to vector<2x32xf32>
    %292 = vector.extract_strided_slice %290 {offsets = [0, 32], sizes = [2, 32], strides = [1, 1]} : vector<2x128xf32> to vector<2x32xf32>
    %293 = vector.extract_strided_slice %290 {offsets = [0, 64], sizes = [2, 32], strides = [1, 1]} : vector<2x128xf32> to vector<2x32xf32>
    %294 = vector.extract_strided_slice %290 {offsets = [0, 96], sizes = [2, 32], strides = [1, 1]} : vector<2x128xf32> to vector<2x32xf32>
    %295 = arith.mulf %292, %257 : vector<2x32xf32>
    %296 = arith.mulf %291, %293 : vector<2x32xf32>
    %297 = arith.addf %295, %296 : vector<2x32xf32>
    %298 = math.tanh %297 : vector<2x32xf32>
    %299 = arith.mulf %294, %298 : vector<2x32xf32>
    %300 = vector.extract_strided_slice %5 {offsets = [14, 0], sizes = [2, 128], strides = [1, 1]} : vector<16x128xf32> to vector<2x128xf32>
    %cst_52 = arith.constant dense<0.000000e+00> : vector<2x128xf32>
    %301 = tpu.matmul %278, %6, %cst_52 {dimension_numbers = #tpu.dot_dimension_numbers<[1], [0], [0], [1], [0, 0, 1, 1], [], []>} : vector<2x32xf32>, vector<32x128xf32>, vector<2x128xf32> -> vector<2x128xf32>
    %302 = arith.addf %300, %301 : vector<2x128xf32>
    %303 = math.tanh %302 : vector<2x128xf32>
    %304 = arith.negf %302 : vector<2x128xf32>
    %305 = math.exp %304 : vector<2x128xf32>
    %cst_53 = arith.constant 1.000000e+00 : f32
    %306 = vector.broadcast %cst_53 : f32 to vector<2x128xf32>
    %307 = arith.addf %306, %305 : vector<2x128xf32>
    %308 = arith.divf %306, %307 : vector<2x128xf32>
    %309 = arith.select %15, %303, %308 : vector<2x128xi1>, vector<2x128xf32>
    %310 = vector.extract_strided_slice %309 {offsets = [0, 0], sizes = [2, 32], strides = [1, 1]} : vector<2x128xf32> to vector<2x32xf32>
    %311 = vector.extract_strided_slice %309 {offsets = [0, 32], sizes = [2, 32], strides = [1, 1]} : vector<2x128xf32> to vector<2x32xf32>
    %312 = vector.extract_strided_slice %309 {offsets = [0, 64], sizes = [2, 32], strides = [1, 1]} : vector<2x128xf32> to vector<2x32xf32>
    %313 = vector.extract_strided_slice %309 {offsets = [0, 96], sizes = [2, 32], strides = [1, 1]} : vector<2x128xf32> to vector<2x32xf32>
    %314 = arith.mulf %311, %276 : vector<2x32xf32>
    %315 = arith.mulf %310, %312 : vector<2x32xf32>
    %316 = arith.addf %314, %315 : vector<2x32xf32>
    %317 = math.tanh %316 : vector<2x32xf32>
    %318 = arith.mulf %313, %317 : vector<2x32xf32>
    %cst_54 = arith.constant dense<0.000000e+00> : vector<2x128xf32>
    %319 = tpu.matmul %318, %7, %cst_54 {dimension_numbers = #tpu.dot_dimension_numbers<[1], [0], [0], [1], [0, 0, 1, 1], [], []>} : vector<2x32xf32>, vector<32x128xf32>, vector<2x128xf32> -> vector<2x128xf32>
    %cst_55 = arith.constant dense<0.000000e+00> : vector<2x128xf32>
    %320 = tpu.matmul %299, %8, %cst_55 {dimension_numbers = #tpu.dot_dimension_numbers<[1], [0], [0], [1], [0, 0, 1, 1], [], []>} : vector<2x32xf32>, vector<32x128xf32>, vector<2x128xf32> -> vector<2x128xf32>
    %321 = arith.addf %319, %320 : vector<2x128xf32>
    %322 = vector.broadcast %9 : vector<1x128xf32> to vector<2x128xf32>
    %323 = arith.addf %321, %322 : vector<2x128xf32>
    %324 = math.tanh %323 : vector<2x128xf32>
    %325 = arith.negf %323 : vector<2x128xf32>
    %326 = math.exp %325 : vector<2x128xf32>
    %cst_56 = arith.constant 1.000000e+00 : f32
    %327 = vector.broadcast %cst_56 : f32 to vector<2x128xf32>
    %328 = arith.addf %327, %326 : vector<2x128xf32>
    %329 = arith.divf %327, %328 : vector<2x128xf32>
    %330 = arith.select %15, %324, %329 : vector<2x128xi1>, vector<2x128xf32>
    %331 = vector.extract_strided_slice %330 {offsets = [0, 0], sizes = [2, 32], strides = [1, 1]} : vector<2x128xf32> to vector<2x32xf32>
    %332 = vector.extract_strided_slice %330 {offsets = [0, 32], sizes = [2, 32], strides = [1, 1]} : vector<2x128xf32> to vector<2x32xf32>
    %333 = vector.extract_strided_slice %330 {offsets = [0, 64], sizes = [2, 32], strides = [1, 1]} : vector<2x128xf32> to vector<2x32xf32>
    %334 = vector.extract_strided_slice %330 {offsets = [0, 96], sizes = [2, 32], strides = [1, 1]} : vector<2x128xf32> to vector<2x32xf32>
    %335 = arith.mulf %332, %297 : vector<2x32xf32>
    %336 = arith.mulf %331, %333 : vector<2x32xf32>
    %337 = arith.addf %335, %336 : vector<2x32xf32>
    %338 = math.tanh %337 : vector<2x32xf32>
    %339 = arith.mulf %334, %338 : vector<2x32xf32>
    %c0_57 = arith.constant 0 : index
    %c0_58 = arith.constant 0 : index
    %340 = vector.load %arg7[%c0_57, %c0_58] : memref<1x32xf32, #tpu.memory_space<vmem>>, vector<1x32xf32>
    %341 = vector.broadcast %340 : vector<1x32xf32> to vector<2x32xf32>
    %342 = arith.mulf %339, %341 : vector<2x32xf32>
    %cst_59 = arith.constant dense<0.000000e+00> : vector<2xf32>
    %343 = vector.multi_reduction <add>, %342, %cst_59 [1] : vector<2x32xf32> to vector<2xf32>
    %344 = vector.shape_cast %343 : vector<2xf32> to vector<2x1xf32>
    %c0_60 = arith.constant 0 : index
    %c0_61 = arith.constant 0 : index
    %345 = vector.load %arg8[%c0_60, %c0_61] : memref<1x1xf32, #tpu.memory_space<vmem>>, vector<1x1xf32>
    %346 = vector.broadcast %345 : vector<1x1xf32> to vector<2x1xf32>
    %347 = arith.addf %344, %346 : vector<2x1xf32>
    %348 = arith.negf %347 : vector<2x1xf32>
    %349 = math.exp %348 : vector<2x1xf32>
    %cst_62 = arith.constant 1.000000e+00 : f32
    %350 = vector.broadcast %cst_62 : f32 to vector<2x1xf32>
    %351 = arith.addf %350, %349 : vector<2x1xf32>
    %352 = arith.divf %350, %351 : vector<2x1xf32>
    %c0_63 = arith.constant 0 : index
    %c0_64 = arith.constant 0 : index
    %353 = vector.load %arg9[%c0_63, %c0_64] : memref<2x1xf32, #tpu.memory_space<vmem>>, vector<2x1xf32>
    tpu.vector_store %arg9[%c0_63, %c0_64], %352 {strides = array<i32>} : memref<2x1xf32, #tpu.memory_space<vmem>>, vector<2x1xf32>,
    %c0_65 = arith.constant 0 : index
    %c0_66 = arith.constant 0 : index
    %354 = vector.load %arg10[%c0_65, %c0_66] : memref<2x1xf32, #tpu.memory_space<vmem>>, vector<2x1xf32>
    tpu.vector_store %arg10[%c0_65, %c0_66], %347 {strides = array<i32>} : memref<2x1xf32, #tpu.memory_space<vmem>>, vector<2x1xf32>,
    %c0_67 = arith.constant 0 : index
    %c0_68 = arith.constant 0 : index
    %355 = vector.load %arg11[%c0_67, %c0_68] : memref<2x32xf32, #tpu.memory_space<vmem>>, vector<2x32xf32>
    tpu.vector_store %arg11[%c0_67, %c0_68], %339 {strides = array<i32>} : memref<2x32xf32, #tpu.memory_space<vmem>>, vector<2x32xf32>,
    return
  }
}

</mosaic_0001>

<llo_original>
// kernel: tpu_custom_call.1
$region0: #{tpu_custom_call.1}
  #allocation0 [shape = 'u32[]', space=smem, size = 0x4, offset = 0x4, fixed_abs, tag = 'smem constant byte address 0x4 - core index']
  #allocation1 [shape = 'u32[72,128]{1,0:T(1,128)}', space=vmem, size = 0x9000, scoped, tag = 'internal scratch']
  #allocation2 [shape = 'f32[1,1]{1,0:T(1,128)S(1)}', space=vmem, size = 0x200, scoped, tag = 'scoped memory for tpu_custom_call.1']
  %s0 = inlined_call_operand.vmem [shape: f32[16,6], index: 0, kind: input, shape index: {}]
  %s1 = inlined_call_operand.vmem [shape: f32[6,128], index: 1, kind: input, shape index: {}]
  %s2 = inlined_call_operand.hbm [shape: f32[32,128], index: 2, kind: input, shape index: {}]
  %s3 = inlined_call_operand.vmem [shape: f32[1,128], index: 3, kind: input, shape index: {}]
  %s4 = inlined_call_operand.hbm [shape: f32[32,128], index: 4, kind: input, shape index: {}]
  %s5 = inlined_call_operand.hbm [shape: f32[32,128], index: 5, kind: input, shape index: {}]
  %s6 = inlined_call_operand.vmem [shape: f32[1,128], index: 6, kind: input, shape index: {}]
  %s7 = inlined_call_operand.vmem [shape: f32[1,32], index: 7, kind: input, shape index: {}]
  %s8 = inlined_call_operand.<no memory space> [shape: f32[1,1], index: 8, kind: input, shape index: {}]
  %s9 = inlined_call_operand.vmem [shape: f32[2,1], index: 9, kind: output, shape index: {0}]
  %s10 = inlined_call_operand.vmem [shape: f32[2,1], index: 10, kind: output, shape index: {1}]
  %s11 = inlined_call_operand.hbm [shape: f32[2,32], index: 11, kind: output, shape index: {2}]
  %12 = xla_tuple %s9, %s10, %s11
  %s13 = sld [smem:[#allocation0]]
  $region74: #{tpu_custom_call.1} parent=0
    _
  %s15 = ssub.s32 1, %s13
  %s16 = scalar_select 0, %s15, %s13
  %v17 = vstv %s8
  %18 = vst [vmem:[#allocation2] sm:$0x1] %v17
  $region1: #{tpu_custom_call.1} parent=0
    #allocation3 [shape = 'u8[16384]{0}', space=vmem, size = 0x4000, scoped, tag = 'input window, operand 2, single buffered']
    #allocation4 [shape = 's32[1]{0}', space=sflag, size = 0x4, scoped, tag = 'scoped memory for tpu_custom_call.1']
    #allocation5 [shape = 's32[1]{0}', space=sflag, size = 0x4, scoped, tag = 'scoped memory for tpu_custom_call.1']
    #allocation6 [shape = 'u8[16384]{0}', space=vmem, size = 0x4000, scoped, tag = 'input window, operand 4, single buffered']
    #allocation7 [shape = 's32[1]{0}', space=sflag, size = 0x4, scoped, tag = 'scoped memory for tpu_custom_call.1']
    #allocation8 [shape = 'u8[16384]{0}', space=vmem, size = 0x4000, scoped, tag = 'input window, operand 5, single buffered']
    #allocation9 [shape = 'u8[1024]{0}', space=vmem, size = 0x400, scoped, tag = 'output window, operand 2, single buffered']
    %19 = vsyncpa [#allocation4], 0
    %20 = vsyncpa [#allocation7], 0
    %21 = vsyncpa [#allocation5], 0
    // Predicated region
    $region2: #{tpu_custom_call.1} parent=1 // pred_check
      _
    $region3: #{tpu_custom_call.1} parent=1 // pred_check_branch
      %23 = sbr.rel (0) target = $region5
    $region4: #{tpu_custom_call.1} parent=1 // pred_region
      _
    $region5: #{tpu_custom_call.1} parent=1 // pred_fallthru
      _
    // Predicated region
    $region6: #{tpu_custom_call.1} parent=1 // pred_check
      _
    $region7: #{tpu_custom_call.1} parent=1 // pred_check_branch
      %25 = sbr.rel (0) target = $region9
    $region8: #{tpu_custom_call.1} parent=1 // pred_region
      _
    $region9: #{tpu_custom_call.1} parent=1 // pred_fallthru
      _
    // Predicated region
    $region10: #{tpu_custom_call.1} parent=1 // pred_check
      _
    $region11: #{tpu_custom_call.1} parent=1 // pred_check_branch
      %27 = sbr.rel (0) target = $region13
    $region12: #{tpu_custom_call.1} parent=1 // pred_region
      %29 = vsyncadd [#allocation4], 0
      %s30 = sshll.u32 %s2, 4
      %s31 = int_to_ptr.hbm [resolvable:$true] %s30
      %s32 = sshll.u32 [#allocation3], 4
      %s33 = int_to_ptr.vmem [resolvable:$true] %s32
      %38 = dma.hbm_to_vmem [thread:$0]  %s31, 512, %s33, [#allocation4], 128, 128, 8
    $region13: #{tpu_custom_call.1} parent=1 // pred_fallthru
      _
    // Predicated region
    $region14: #{tpu_custom_call.1} parent=1 // pred_check
      _
    $region15: #{tpu_custom_call.1} parent=1 // pred_check_branch
      %40 = sbr.rel (0) target = $region17
    $region16: #{tpu_custom_call.1} parent=1 // pred_region
      _
    $region17: #{tpu_custom_call.1} parent=1 // pred_fallthru
      _
    // Predicated region
    $region18: #{tpu_custom_call.1} parent=1 // pred_check
      _
    $region19: #{tpu_custom_call.1} parent=1 // pred_check_branch
      %42 = sbr.rel (0) target = $region21
    $region20: #{tpu_custom_call.1} parent=1 // pred_region
      %44 = vsyncadd [#allocation7], 0
      %s45 = sshll.u32 %s4, 4
      %s46 = int_to_ptr.hbm [resolvable:$true] %s45
      %s47 = sshll.u32 [#allocation6], 4
      %s48 = int_to_ptr.vmem [resolvable:$true] %s47
      %53 = dma.hbm_to_vmem [thread:$0]  %s46, 512, %s48, [#allocation7], 128, 128, 8
    $region21: #{tpu_custom_call.1} parent=1 // pred_fallthru
      _
    // Predicated region
    $region22: #{tpu_custom_call.1} parent=1 // pred_check
      _
    $region23: #{tpu_custom_call.1} parent=1 // pred_check_branch
      %55 = sbr.rel (0) target = $region25
    $region24: #{tpu_custom_call.1} parent=1 // pred_region
      %57 = vsyncadd [#allocation7], 0
      %s58 = sshll.u32 %s5, 4
      %s59 = int_to_ptr.hbm [resolvable:$true] %s58
      %s60 = sshll.u32 [#allocation8], 4
      %s61 = int_to_ptr.vmem [resolvable:$true] %s60
      %66 = dma.hbm_to_vmem [thread:$0]  %s59, 512, %s61, [#allocation7], 128, 128, 8
    $region25: #{tpu_custom_call.1} parent=1 // pred_fallthru
      _
    // Predicated region
    $region26: #{tpu_custom_call.1} parent=1 // pred_check
      _
    $region27: #{tpu_custom_call.1} parent=1 // pred_check_branch
      %68 = sbr.rel (0) target = $region29
    $region28: #{tpu_custom_call.1} parent=1 // pred_region
      _
    $region29: #{tpu_custom_call.1} parent=1 // pred_fallthru
      _
    // Predicated region
    $region30: #{tpu_custom_call.1} parent=1 // pred_check
      _
    $region31: #{tpu_custom_call.1} parent=1 // pred_check_branch
      %70 = sbr.rel (0) target = $region33
    $region32: #{tpu_custom_call.1} parent=1 // pred_region
      _
    $region33: #{tpu_custom_call.1} parent=1 // pred_fallthru
      _
    // Predicated region
    $region34: #{tpu_custom_call.1} parent=1 // pred_check
      _
    $region35: #{tpu_custom_call.1} parent=1 // pred_check_branch
      %72 = sbr.rel (0) target = $region37
    $region36: #{tpu_custom_call.1} parent=1 // pred_region
      _
    $region37: #{tpu_custom_call.1} parent=1 // pred_fallthru
      _
    // Predicated region
    $region38: #{tpu_custom_call.1} parent=1 // pred_check
      _
    $region39: #{tpu_custom_call.1} parent=1 // pred_check_branch
      %74 = sbr.rel (0) target = $region41
    $region40: #{tpu_custom_call.1} parent=1 // pred_region
      %76 = dma.done [#allocation4], 512
    $region41: #{tpu_custom_call.1} parent=1 // pred_fallthru
      _
    // Predicated region
    $region42: #{tpu_custom_call.1} parent=1 // pred_check
      _
    $region43: #{tpu_custom_call.1} parent=1 // pred_check_branch
      %78 = sbr.rel (0) target = $region45
    $region44: #{tpu_custom_call.1} parent=1 // pred_region
      %80 = dma.done [#allocation7], 512
    $region45: #{tpu_custom_call.1} parent=1 // pred_fallthru
      _
    // Predicated region
    $region46: #{tpu_custom_call.1} parent=1 // pred_check
      _
    $region47: #{tpu_custom_call.1} parent=1 // pred_check_branch
      %82 = sbr.rel (0) target = $region49
    $region48: #{tpu_custom_call.1} parent=1 // pred_region
      %84 = dma.done [#allocation7], 512
    $region49: #{tpu_custom_call.1} parent=1 // pred_fallthru
      _
    %v85 = vld [vmem:[%s0] sm:$0xff]
    %v86 = vld [vmem:[%s0 + $0x8] sm:$0xff]
    %v87 = vld [vmem:[%s1] sm:$0x3f]
    %v88 = vld [vmem:[%s3] sm:$0x1]
    %v90 = vperm.slane %v88, 0
    %vm92 = vcmask 48128
    %v94 = vsel %vm92, %v85, 0
    %v97 = vsel %vm92, %v86, 0
    %vm99 = vcmask 1045504
    %v101 = vsel %vm99, %v87, 0
    %103 = vmatpush.msra.mxu0 0.0
    %104 = vmatpush.msra.mxu0 0.0
    %105 = vmatpush.msra.mxu0 0.0
    %106 = vmatpush.msra.mxu0 0.0
    %107 = vmatpush.msra.mxu0 0.0
    %108 = vmatpush.msra.mxu0 0.0
    %109 = vmatpush.msra.mxu0 0.0
    %110 = vmatpush.msra.mxu0 0.0
    %111 = vmatpush.msra.mxu0 0.0
    %112 = vmatpush.msra.mxu0 0.0
    %113 = vmatpush.msra.mxu0 0.0
    %114 = vmatpush.msra.mxu0 0.0
    %115 = vmatpush.msra.mxu0 0.0
    %116 = vmatpush.msra.mxu0 0.0
    %117 = vmatpush.msra.mxu0 0.0
    %118 = vmatpush.msra.mxu0 %v101
    %119 = vmatmul.f32.gmra.mxu0 %v94
    %v120 = vpop.f32.mrf.mxu0
    %v121 = vadd.f32 %v90, %v120
    %122 = vmatmul.f32.gmra.mxu0 %v97
    %v123 = vpop.f32.mrf.mxu0
    %v124 = vadd.f32 %v90, %v123
    %125 = vdwg.mxu0
    %v126 = vld [vmem:[#allocation3] sm:$0xff]
    %v127 = vld [vmem:[#allocation3 + $0x8] sm:$0xff]
    %v128 = vld [vmem:[#allocation3 + $0x10] sm:$0xff]
    %v129 = vld [vmem:[#allocation3 + $0x18] sm:$0xff]
    %v130 = vld [vmem:[#allocation6] sm:$0xff]
    %v131 = vld [vmem:[#allocation6 + $0x8] sm:$0xff]
    %v132 = vld [vmem:[#allocation6 + $0x10] sm:$0xff]
    %v133 = vld [vmem:[#allocation6 + $0x18] sm:$0xff]
    %v134 = vld [vmem:[#allocation8] sm:$0xff]
    %v135 = vld [vmem:[#allocation8 + $0x8] sm:$0xff]
    %v136 = vld [vmem:[#allocation8 + $0x10] sm:$0xff]
    %v137 = vld [vmem:[#allocation8 + $0x18] sm:$0xff]
    %v138 = vld [vmem:[%s6] sm:$0x1]
    %v139 = vlaneseq
    %v140 = vand.u32 %v139, 127
    %vm141 = vcmp.ge.s32.totalorder %v140, 64
    %vm142 = vcmp.lt.s32.totalorder %v140, 96
    %vm143 = vmand %vm141, %vm142
    %vm144 = vcmask 261120
    %v146 = vsel %vm144, 0.0, 0
    %148 = vmatpush.msra.mxu0 0.0
    %149 = vmatpush.msra.mxu0 0.0
    %150 = vmatpush.msra.mxu0 0.0
    %151 = vmatpush.msra.mxu0 0.0
    %152 = vmatpush.msra.mxu0 0.0
    %153 = vmatpush.msra.mxu0 0.0
    %154 = vmatpush.msra.mxu0 0.0
    %155 = vmatpush.msra.mxu0 0.0
    %156 = vmatpush.msra.mxu0 0.0
    %157 = vmatpush.msra.mxu0 0.0
    %158 = vmatpush.msra.mxu0 0.0
    %159 = vmatpush.msra.mxu0 0.0
    %160 = vmatpush.msra.mxu0 %v129
    %161 = vmatpush.msra.mxu0 %v128
    %162 = vmatpush.msra.mxu0 %v127
    %163 = vmatpush.msra.mxu0 %v126
    %164 = vmatmul.f32.gmra.mxu0 %v146
    %v165 = vpop.f32.mrf.mxu0
    %v166 = vadd.f32 0.0, %v165
    %167 = vdwg.mxu0
    %v168 = vadd.f32 %v121, %v166
    %v169 = vtanh.pop %v168
    %v170 = vxor.u32 %v168, 2147483648
    %v171 = vmul.f32 %v170, 1.442695
    %v172 = vpow.pop %v171
    %v173 = vadd.f32 %v172, 1.0
    %v174 = vrcp.pop %v173
    %v175 = vmul.f32 %v173, %v174
    %v176 = vsub.f32 1.0, %v175
    %v177 = vmul.f32 %v174, %v176
    %v178 = vadd.f32 %v174, %v177
    %vm179 = vweird.f32 %v173
    %vm180 = vweird.f32 %v174
    %vm181 = vmor %vm179, %vm180
    %v182 = vsel %vm181, %v174, %v178
    %v183 = vand.u32 2147483647, %v173
    %vm184 = vcmp.eq.f32.partialorder %v183, 8.507059e+37
    %v185 = vand.u32 %v173, 2147483648
    %v186 = vor.u32 1.1754944e-38, %v185
    %v187 = vsel %vm184, %v186, %v182
    %v188 = vmul.f32 1.0, %v187
    %v189 = vsel %vm143, %v169, %v188
    %v190 = vmul.f32 %v189, 0.0
    %192 = vrot.lane.b32.xlu0 %v189, 64
    %v193 = vpop.permute.xlu0 %192
    %v195 = vmul.f32 %v189, %v193
    %197 = vrot.lane.b32.xlu0 %v195, 32
    %v198 = vpop.permute.xlu0 %197
    %v200 = vadd.f32 %v190, %v198
    %v201 = vtanh.pop %v200
    %203 = vrot.lane.b32.xlu0 %v201, 64
    %v204 = vpop.permute.xlu0 %203
    %v206 = vmul.f32 %v189, %v204
    %207 = vmatpush.msra.mxu0 0.0
    %208 = vmatpush.msra.mxu0 0.0
    %209 = vmatpush.msra.mxu0 0.0
    %210 = vmatpush.msra.mxu0 0.0
    %211 = vmatpush.msra.mxu0 0.0
    %212 = vmatpush.msra.mxu0 0.0
    %213 = vmatpush.msra.mxu0 0.0
    %214 = vmatpush.msra.mxu0 0.0
    %215 = vmatpush.msra.mxu0 0.0
    %216 = vmatpush.msra.mxu0 0.0
    %217 = vmatpush.msra.mxu0 0.0
    %218 = vmatpush.msra.mxu0 0.0
    %219 = vmatpush.msra.mxu0 %v137
    %220 = vmatpush.msra.mxu0 %v136
    %221 = vmatpush.msra.mxu0 %v135
    %222 = vmatpush.msra.mxu0 %v134
    %223 = vmatmul.f32.gmra.mxu0 %v146
    %v224 = vpop.f32.mrf.mxu0
    %v225 = vadd.f32 0.0, %v224
    %226 = vdwg.mxu0
    %228 = vrot.lane.b32.xlu0 %v206, 32
    %v229 = vpop.permute.xlu0 %228
    %v230 = vsel %vm144, %v229, 0
    %232 = vmatpush.msra.mxu0 0.0
    %233 = vmatpush.msra.mxu0 0.0
    %234 = vmatpush.msra.mxu0 0.0
    %235 = vmatpush.msra.mxu0 0.0
    %236 = vmatpush.msra.mxu0 0.0
    %237 = vmatpush.msra.mxu0 0.0
    %238 = vmatpush.msra.mxu0 0.0
    %239 = vmatpush.msra.mxu0 0.0
    %240 = vmatpush.msra.mxu0 0.0
    %241 = vmatpush.msra.mxu0 0.0
    %242 = vmatpush.msra.mxu0 0.0
    %243 = vmatpush.msra.mxu0 0.0
    %244 = vmatpush.msra.mxu0 %v133
    %245 = vmatpush.msra.mxu0 %v132
    %246 = vmatpush.msra.mxu0 %v131
    %247 = vmatpush.msra.mxu0 %v130
    %248 = vmatmul.f32.gmra.mxu0 %v230
    %v249 = vpop.f32.mrf.mxu0
    %v250 = vadd.f32 %v225, %v249
    %251 = vdwg.mxu0
    %v253 = vperm.slane %v138, 0
    %v255 = vadd.f32 %v250, %v253
    %v256 = vtanh.pop %v255
    %v257 = vxor.u32 %v255, 2147483648
    %v258 = vmul.f32 %v257, 1.442695
    %v259 = vpow.pop %v258
    %v260 = vadd.f32 %v259, 1.0
    %v261 = vrcp.pop %v260
    %v262 = vmul.f32 %v260, %v261
    %v263 = vsub.f32 1.0, %v262
    %v264 = vmul.f32 %v261, %v263
    %v265 = vadd.f32 %v261, %v264
    %vm266 = vweird.f32 %v260
    %vm267 = vweird.f32 %v261
    %vm268 = vmor %vm266, %vm267
    %v269 = vsel %vm268, %v261, %v265
    %v270 = vand.u32 2147483647, %v260
    %vm271 = vcmp.eq.f32.partialorder %v270, 8.507059e+37
    %v272 = vand.u32 %v260, 2147483648
    %v273 = vor.u32 1.1754944e-38, %v272
    %v274 = vsel %vm271, %v273, %v269
    %v275 = vmul.f32 1.0, %v274
    %v276 = vsel %vm143, %v256, %v275
    %v277 = vmul.f32 %v276, 0.0
    %279 = vrot.lane.b32.xlu0 %v276, 64
    %v280 = vpop.permute.xlu0 %279
    %v282 = vmul.f32 %v276, %v280
    %284 = vrot.lane.b32.xlu0 %v282, 32
    %v285 = vpop.permute.xlu0 %284
    %v287 = vadd.f32 %v277, %v285
    %v288 = vtanh.pop %v287
    %290 = vrot.lane.b32.xlu0 %v288, 64
    %v291 = vpop.permute.xlu0 %290
    %v293 = vmul.f32 %v276, %v291
    %294 = vmatpush.msra.mxu0 0.0
    %295 = vmatpush.msra.mxu0 0.0
    %296 = vmatpush.msra.mxu0 0.0
    %297 = vmatpush.msra.mxu0 0.0
    %298 = vmatpush.msra.mxu0 0.0
    %299 = vmatpush.msra.mxu0 0.0
    %300 = vmatpush.msra.mxu0 0.0
    %301 = vmatpush.msra.mxu0 0.0
    %302 = vmatpush.msra.mxu0 0.0
    %303 = vmatpush.msra.mxu0 0.0
    %304 = vmatpush.msra.mxu0 0.0
    %305 = vmatpush.msra.mxu0 0.0
    %306 = vmatpush.msra.mxu0 %v129
    %307 = vmatpush.msra.mxu0 %v128
    %308 = vmatpush.msra.mxu0 %v127
    %309 = vmatpush.msra.mxu0 %v126
    %310 = vmatmul.f32.gmra.mxu0 %v230
    %v311 = vpop.f32.mrf.mxu0
    %v312 = vadd.f32 0.0, %v311
    %313 = vdwg.mxu0
    %v315 = vrot.slane %v312, 6
    %v317 = vadd.f32 %v121, %v315
    %v318 = vtanh.pop %v317
    %v319 = vxor.u32 %v317, 2147483648
    %v320 = vmul.f32 %v319, 1.442695
    %v321 = vpow.pop %v320
    %v322 = vadd.f32 %v321, 1.0
    %v323 = vrcp.pop %v322
    %v324 = vmul.f32 %v322, %v323
    %v325 = vsub.f32 1.0, %v324
    %v326 = vmul.f32 %v323, %v325
    %v327 = vadd.f32 %v323, %v326
    %vm328 = vweird.f32 %v322
    %vm329 = vweird.f32 %v323
    %vm330 = vmor %vm328, %vm329
    %v331 = vsel %vm330, %v323, %v327
    %v332 = vand.u32 2147483647, %v322
    %vm333 = vcmp.eq.f32.partialorder %v332, 8.507059e+37
    %v334 = vand.u32 %v322, 2147483648
    %v335 = vor.u32 1.1754944e-38, %v334
    %v336 = vsel %vm333, %v335, %v331
    %v337 = vmul.f32 1.0, %v336
    %v338 = vsel %vm143, %v318, %v337
    %v340 = vrot.slane %v200, 6
    %v342 = vmul.f32 %v338, %v340
    %344 = vrot.lane.b32.xlu0 %v338, 64
    %v345 = vpop.permute.xlu0 %344
    %v347 = vmul.f32 %v338, %v345
    %349 = vrot.lane.b32.xlu0 %v347, 32
    %v350 = vpop.permute.xlu0 %349
    %v352 = vadd.f32 %v342, %v350
    %v353 = vtanh.pop %v352
    %355 = vrot.lane.b32.xlu0 %v353, 64
    %v356 = vpop.permute.xlu0 %355
    %v358 = vmul.f32 %v338, %v356
    %360 = vrot.lane.b32.xlu0 %v293, 32
    %v361 = vpop.permute.xlu0 %360
    %v362 = vsel %vm144, %v361, 0
    %364 = vmatpush.msra.mxu0 0.0
    %365 = vmatpush.msra.mxu0 0.0
    %366 = vmatpush.msra.mxu0 0.0
    %367 = vmatpush.msra.mxu0 0.0
    %368 = vmatpush.msra.mxu0 0.0
    %369 = vmatpush.msra.mxu0 0.0
    %370 = vmatpush.msra.mxu0 0.0
    %371 = vmatpush.msra.mxu0 0.0
    %372 = vmatpush.msra.mxu0 0.0
    %373 = vmatpush.msra.mxu0 0.0
    %374 = vmatpush.msra.mxu0 0.0
    %375 = vmatpush.msra.mxu0 0.0
    %376 = vmatpush.msra.mxu0 %v137
    %377 = vmatpush.msra.mxu0 %v136
    %378 = vmatpush.msra.mxu0 %v135
    %379 = vmatpush.msra.mxu0 %v134
    %380 = vmatmul.f32.gmra.mxu0 %v362
    %v381 = vpop.f32.mrf.mxu0
    %v382 = vadd.f32 0.0, %v381
    %383 = vdwg.mxu0
    %v385 = vrot.slane %v358, 2
    %386 = vrot.lane.b32.xlu0 %v385, 32
    %v387 = vpop.permute.xlu0 %386
    %v388 = vsel %vm144, %v387, 0
    %390 = vmatpush.msra.mxu0 0.0
    %391 = vmatpush.msra.mxu0 0.0
    %392 = vmatpush.msra.mxu0 0.0
    %393 = vmatpush.msra.mxu0 0.0
    %394 = vmatpush.msra.mxu0 0.0
    %395 = vmatpush.msra.mxu0 0.0
    %396 = vmatpush.msra.mxu0 0.0
    %397 = vmatpush.msra.mxu0 0.0
    %398 = vmatpush.msra.mxu0 0.0
    %399 = vmatpush.msra.mxu0 0.0
    %400 = vmatpush.msra.mxu0 0.0
    %401 = vmatpush.msra.mxu0 0.0
    %402 = vmatpush.msra.mxu0 %v133
    %403 = vmatpush.msra.mxu0 %v132
    %404 = vmatpush.msra.mxu0 %v131
    %405 = vmatpush.msra.mxu0 %v130
    %406 = vmatmul.f32.gmra.mxu0 %v388
    %v407 = vpop.f32.mrf.mxu0
    %v408 = vadd.f32 %v382, %v407
    %409 = vdwg.mxu0
    %v410 = vadd.f32 %v408, %v253
    %v411 = vtanh.pop %v410
    %v412 = vxor.u32 %v410, 2147483648
    %v413 = vmul.f32 %v412, 1.442695
    %v414 = vpow.pop %v413
    %v415 = vadd.f32 %v414, 1.0
    %v416 = vrcp.pop %v415
    %v417 = vmul.f32 %v415, %v416
    %v418 = vsub.f32 1.0, %v417
    %v419 = vmul.f32 %v416, %v418
    %v420 = vadd.f32 %v416, %v419
    %vm421 = vweird.f32 %v415
    %vm422 = vweird.f32 %v416
    %vm423 = vmor %vm421, %vm422
    %v424 = vsel %vm423, %v416, %v420
    %v425 = vand.u32 2147483647, %v415
    %vm426 = vcmp.eq.f32.partialorder %v425, 8.507059e+37
    %v427 = vand.u32 %v415, 2147483648
    %v428 = vor.u32 1.1754944e-38, %v427
    %v429 = vsel %vm426, %v428, %v424
    %v430 = vmul.f32 1.0, %v429
    %v431 = vsel %vm143, %v411, %v430
    %v432 = vmul.f32 %v431, %v287
    %434 = vrot.lane.b32.xlu0 %v431, 64
    %v435 = vpop.permute.xlu0 %434
    %v437 = vmul.f32 %v431, %v435
    %439 = vrot.lane.b32.xlu0 %v437, 32
    %v440 = vpop.permute.xlu0 %439
    %v442 = vadd.f32 %v432, %v440
    %v443 = vtanh.pop %v442
    %445 = vrot.lane.b32.xlu0 %v443, 64
    %v446 = vpop.permute.xlu0 %445
    %v448 = vmul.f32 %v431, %v446
    %449 = vmatpush.msra.mxu0 0.0
    %450 = vmatpush.msra.mxu0 0.0
    %451 = vmatpush.msra.mxu0 0.0
    %452 = vmatpush.msra.mxu0 0.0
    %453 = vmatpush.msra.mxu0 0.0
    %454 = vmatpush.msra.mxu0 0.0
    %455 = vmatpush.msra.mxu0 0.0
    %456 = vmatpush.msra.mxu0 0.0
    %457 = vmatpush.msra.mxu0 0.0
    %458 = vmatpush.msra.mxu0 0.0
    %459 = vmatpush.msra.mxu0 0.0
    %460 = vmatpush.msra.mxu0 0.0
    %461 = vmatpush.msra.mxu0 %v129
    %462 = vmatpush.msra.mxu0 %v128
    %463 = vmatpush.msra.mxu0 %v127
    %464 = vmatpush.msra.mxu0 %v126
    %465 = vmatmul.f32.gmra.mxu0 %v388
    %v466 = vpop.f32.mrf.mxu0
    %v467 = vadd.f32 0.0, %v466
    %468 = vdwg.mxu0
    %v470 = vrot.slane %v467, 4
    %v472 = vadd.f32 %v121, %v470
    %v473 = vtanh.pop %v472
    %v474 = vxor.u32 %v472, 2147483648
    %v475 = vmul.f32 %v474, 1.442695
    %v476 = vpow.pop %v475
    %v477 = vadd.f32 %v476, 1.0
    %v478 = vrcp.pop %v477
    %v479 = vmul.f32 %v477, %v478
    %v480 = vsub.f32 1.0, %v479
    %v481 = vmul.f32 %v478, %v480
    %v482 = vadd.f32 %v478, %v481
    %vm483 = vweird.f32 %v477
    %vm484 = vweird.f32 %v478
    %vm485 = vmor %vm483, %vm484
    %v486 = vsel %vm485, %v478, %v482
    %v487 = vand.u32 2147483647, %v477
    %vm488 = vcmp.eq.f32.partialorder %v487, 8.507059e+37
    %v489 = vand.u32 %v477, 2147483648
    %v490 = vor.u32 1.1754944e-38, %v489
    %v491 = vsel %vm488, %v490, %v486
    %v492 = vmul.f32 1.0, %v491
    %v493 = vsel %vm143, %v473, %v492
    %v495 = vrot.slane %v352, 6
    %v497 = vmul.f32 %v493, %v495
    %499 = vrot.lane.b32.xlu0 %v493, 64
    %v500 = vpop.permute.xlu0 %499
    %v502 = vmul.f32 %v493, %v500
    %504 = vrot.lane.b32.xlu0 %v502, 32
    %v505 = vpop.permute.xlu0 %504
    %v507 = vadd.f32 %v497, %v505
    %v508 = vtanh.pop %v507
    %510 = vrot.lane.b32.xlu0 %v508, 64
    %v511 = vpop.permute.xlu0 %510
    %v513 = vmul.f32 %v493, %v511
    %515 = vrot.lane.b32.xlu0 %v448, 32
    %v516 = vpop.permute.xlu0 %515
    %v517 = vsel %vm144, %v516, 0
    %519 = vmatpush.msra.mxu0 0.0
    %520 = vmatpush.msra.mxu0 0.0
    %521 = vmatpush.msra.mxu0 0.0
    %522 = vmatpush.msra.mxu0 0.0
    %523 = vmatpush.msra.mxu0 0.0
    %524 = vmatpush.msra.mxu0 0.0
    %525 = vmatpush.msra.mxu0 0.0
    %526 = vmatpush.msra.mxu0 0.0
    %527 = vmatpush.msra.mxu0 0.0
    %528 = vmatpush.msra.mxu0 0.0
    %529 = vmatpush.msra.mxu0 0.0
    %530 = vmatpush.msra.mxu0 0.0
    %531 = vmatpush.msra.mxu0 %v137
    %532 = vmatpush.msra.mxu0 %v136
    %533 = vmatpush.msra.mxu0 %v135
    %534 = vmatpush.msra.mxu0 %v134
    %535 = vmatmul.f32.gmra.mxu0 %v517
    %v536 = vpop.f32.mrf.mxu0
    %v537 = vadd.f32 0.0, %v536
    %538 = vdwg.mxu0
    %v540 = vrot.slane %v513, 4
    %541 = vrot.lane.b32.xlu0 %v540, 32
    %v542 = vpop.permute.xlu0 %541
    %v543 = vsel %vm144, %v542, 0
    %545 = vmatpush.msra.mxu0 0.0
    %546 = vmatpush.msra.mxu0 0.0
    %547 = vmatpush.msra.mxu0 0.0
    %548 = vmatpush.msra.mxu0 0.0
    %549 = vmatpush.msra.mxu0 0.0
    %550 = vmatpush.msra.mxu0 0.0
    %551 = vmatpush.msra.mxu0 0.0
    %552 = vmatpush.msra.mxu0 0.0
    %553 = vmatpush.msra.mxu0 0.0
    %554 = vmatpush.msra.mxu0 0.0
    %555 = vmatpush.msra.mxu0 0.0
    %556 = vmatpush.msra.mxu0 0.0
    %557 = vmatpush.msra.mxu0 %v133
    %558 = vmatpush.msra.mxu0 %v132
    %559 = vmatpush.msra.mxu0 %v131
    %560 = vmatpush.msra.mxu0 %v130
    %561 = vmatmul.f32.gmra.mxu0 %v543
    %v562 = vpop.f32.mrf.mxu0
    %v563 = vadd.f32 %v537, %v562
    %564 = vdwg.mxu0
    %v565 = vadd.f32 %v563, %v253
    %v566 = vtanh.pop %v565
    %v567 = vxor.u32 %v565, 2147483648
    %v568 = vmul.f32 %v567, 1.442695
    %v569 = vpow.pop %v568
    %v570 = vadd.f32 %v569, 1.0
    %v571 = vrcp.pop %v570
    %v572 = vmul.f32 %v570, %v571
    %v573 = vsub.f32 1.0, %v572
    %v574 = vmul.f32 %v571, %v573
    %v575 = vadd.f32 %v571, %v574
    %vm576 = vweird.f32 %v570
    %vm577 = vweird.f32 %v571
    %vm578 = vmor %vm576, %vm577
    %v579 = vsel %vm578, %v571, %v575
    %v580 = vand.u32 2147483647, %v570
    %vm581 = vcmp.eq.f32.partialorder %v580, 8.507059e+37
    %v582 = vand.u32 %v570, 2147483648
    %v583 = vor.u32 1.1754944e-38, %v582
    %v584 = vsel %vm581, %v583, %v579
    %v585 = vmul.f32 1.0, %v584
    %v586 = vsel %vm143, %v566, %v585
    %v587 = vmul.f32 %v586, %v442
    %589 = vrot.lane.b32.xlu0 %v586, 64
    %v590 = vpop.permute.xlu0 %589
    %v592 = vmul.f32 %v586, %v590
    %594 = vrot.lane.b32.xlu0 %v592, 32
    %v595 = vpop.permute.xlu0 %594
    %v597 = vadd.f32 %v587, %v595
    %v598 = vtanh.pop %v597
    %600 = vrot.lane.b32.xlu0 %v598, 64
    %v601 = vpop.permute.xlu0 %600
    %v603 = vmul.f32 %v586, %v601
    %604 = vmatpush.msra.mxu0 0.0
    %605 = vmatpush.msra.mxu0 0.0
    %606 = vmatpush.msra.mxu0 0.0
    %607 = vmatpush.msra.mxu0 0.0
    %608 = vmatpush.msra.mxu0 0.0
    %609 = vmatpush.msra.mxu0 0.0
    %610 = vmatpush.msra.mxu0 0.0
    %611 = vmatpush.msra.mxu0 0.0
    %612 = vmatpush.msra.mxu0 0.0
    %613 = vmatpush.msra.mxu0 0.0
    %614 = vmatpush.msra.mxu0 0.0
    %615 = vmatpush.msra.mxu0 0.0
    %616 = vmatpush.msra.mxu0 %v129
    %617 = vmatpush.msra.mxu0 %v128
    %618 = vmatpush.msra.mxu0 %v127
    %619 = vmatpush.msra.mxu0 %v126
    %620 = vmatmul.f32.gmra.mxu0 %v543
    %v621 = vpop.f32.mrf.mxu0
    %v622 = vadd.f32 0.0, %v621
    %623 = vdwg.mxu0
    %v625 = vrot.slane %v622, 2
    %v627 = vadd.f32 %v121, %v625
    %v628 = vtanh.pop %v627
    %v629 = vxor.u32 %v627, 2147483648
    %v630 = vmul.f32 %v629, 1.442695
    %v631 = vpow.pop %v630
    %v632 = vadd.f32 %v631, 1.0
    %v633 = vrcp.pop %v632
    %v634 = vmul.f32 %v632, %v633
    %v635 = vsub.f32 1.0, %v634
    %v636 = vmul.f32 %v633, %v635
    %v637 = vadd.f32 %v633, %v636
    %vm638 = vweird.f32 %v632
    %vm639 = vweird.f32 %v633
    %vm640 = vmor %vm638, %vm639
    %v641 = vsel %vm640, %v633, %v637
    %v642 = vand.u32 2147483647, %v632
    %vm643 = vcmp.eq.f32.partialorder %v642, 8.507059e+37
    %v644 = vand.u32 %v632, 2147483648
    %v645 = vor.u32 1.1754944e-38, %v644
    %v646 = vsel %vm643, %v645, %v641
    %v647 = vmul.f32 1.0, %v646
    %v648 = vsel %vm143, %v628, %v647
    %v650 = vrot.slane %v507, 6
    %v652 = vmul.f32 %v648, %v650
    %654 = vrot.lane.b32.xlu0 %v648, 64
    %v655 = vpop.permute.xlu0 %654
    %v657 = vmul.f32 %v648, %v655
    %659 = vrot.lane.b32.xlu0 %v657, 32
    %v660 = vpop.permute.xlu0 %659
    %v662 = vadd.f32 %v652, %v660
    %v663 = vtanh.pop %v662
    %665 = vrot.lane.b32.xlu0 %v663, 64
    %v666 = vpop.permute.xlu0 %665
    %v668 = vmul.f32 %v648, %v666
    %670 = vrot.lane.b32.xlu0 %v603, 32
    %v671 = vpop.permute.xlu0 %670
    %v672 = vsel %vm144, %v671, 0
    %674 = vmatpush.msra.mxu0 0.0
    %675 = vmatpush.msra.mxu0 0.0
    %676 = vmatpush.msra.mxu0 0.0
    %677 = vmatpush.msra.mxu0 0.0
    %678 = vmatpush.msra.mxu0 0.0
    %679 = vmatpush.msra.mxu0 0.0
    %680 = vmatpush.msra.mxu0 0.0
    %681 = vmatpush.msra.mxu0 0.0
    %682 = vmatpush.msra.mxu0 0.0
    %683 = vmatpush.msra.mxu0 0.0
    %684 = vmatpush.msra.mxu0 0.0
    %685 = vmatpush.msra.mxu0 0.0
    %686 = vmatpush.msra.mxu0 %v137
    %687 = vmatpush.msra.mxu0 %v136
    %688 = vmatpush.msra.mxu0 %v135
    %689 = vmatpush.msra.mxu0 %v134
    %690 = vmatmul.f32.gmra.mxu0 %v672
    %v691 = vpop.f32.mrf.mxu0
    %v692 = vadd.f32 0.0, %v691
    %693 = vdwg.mxu0
    %v695 = vrot.slane %v668, 6
    %696 = vrot.lane.b32.xlu0 %v695, 32
    %v697 = vpop.permute.xlu0 %696
    %v698 = vsel %vm144, %v697, 0
    %700 = vmatpush.msra.mxu0 0.0
    %701 = vmatpush.msra.mxu0 0.0
    %702 = vmatpush.msra.mxu0 0.0
    %703 = vmatpush.msra.mxu0 0.0
    %704 = vmatpush.msra.mxu0 0.0
    %705 = vmatpush.msra.mxu0 0.0
    %706 = vmatpush.msra.mxu0 0.0
    %707 = vmatpush.msra.mxu0 0.0
    %708 = vmatpush.msra.mxu0 0.0
    %709 = vmatpush.msra.mxu0 0.0
    %710 = vmatpush.msra.mxu0 0.0
    %711 = vmatpush.msra.mxu0 0.0
    %712 = vmatpush.msra.mxu0 %v133
    %713 = vmatpush.msra.mxu0 %v132
    %714 = vmatpush.msra.mxu0 %v131
    %715 = vmatpush.msra.mxu0 %v130
    %716 = vmatmul.f32.gmra.mxu0 %v698
    %v717 = vpop.f32.mrf.mxu0
    %v718 = vadd.f32 %v692, %v717
    %719 = vdwg.mxu0
    %v720 = vadd.f32 %v718, %v253
    %v721 = vtanh.pop %v720
    %v722 = vxor.u32 %v720, 2147483648
    %v723 = vmul.f32 %v722, 1.442695
    %v724 = vpow.pop %v723
    %v725 = vadd.f32 %v724, 1.0
    %v726 = vrcp.pop %v725
    %v727 = vmul.f32 %v725, %v726
    %v728 = vsub.f32 1.0, %v727
    %v729 = vmul.f32 %v726, %v728
    %v730 = vadd.f32 %v726, %v729
    %vm731 = vweird.f32 %v725
    %vm732 = vweird.f32 %v726
    %vm733 = vmor %vm731, %vm732
    %v734 = vsel %vm733, %v726, %v730
    %v735 = vand.u32 2147483647, %v725
    %vm736 = vcmp.eq.f32.partialorder %v735, 8.507059e+37
    %v737 = vand.u32 %v725, 2147483648
    %v738 = vor.u32 1.1754944e-38, %v737
    %v739 = vsel %vm736, %v738, %v734
    %v740 = vmul.f32 1.0, %v739
    %v741 = vsel %vm143, %v721, %v740
    %v742 = vmul.f32 %v741, %v597
    %744 = vrot.lane.b32.xlu0 %v741, 64
    %v745 = vpop.permute.xlu0 %744
    %v747 = vmul.f32 %v741, %v745
    %749 = vrot.lane.b32.xlu0 %v747, 32
    %v750 = vpop.permute.xlu0 %749
    %v752 = vadd.f32 %v742, %v750
    %v753 = vtanh.pop %v752
    %755 = vrot.lane.b32.xlu0 %v753, 64
    %v756 = vpop.permute.xlu0 %755
    %v758 = vmul.f32 %v741, %v756
    %759 = vmatpush.msra.mxu0 0.0
    %760 = vmatpush.msra.mxu0 0.0
    %761 = vmatpush.msra.mxu0 0.0
    %762 = vmatpush.msra.mxu0 0.0
    %763 = vmatpush.msra.mxu0 0.0
    %764 = vmatpush.msra.mxu0 0.0
    %765 = vmatpush.msra.mxu0 0.0
    %766 = vmatpush.msra.mxu0 0.0
    %767 = vmatpush.msra.mxu0 0.0
    %768 = vmatpush.msra.mxu0 0.0
    %769 = vmatpush.msra.mxu0 0.0
    %770 = vmatpush.msra.mxu0 0.0
    %771 = vmatpush.msra.mxu0 %v129
    %772 = vmatpush.msra.mxu0 %v128
    %773 = vmatpush.msra.mxu0 %v127
    %774 = vmatpush.msra.mxu0 %v126
    %775 = vmatmul.f32.gmra.mxu0 %v698
    %v776 = vpop.f32.mrf.mxu0
    %v777 = vadd.f32 0.0, %v776
    %778 = vdwg.mxu0
    %v779 = vadd.f32 %v124, %v777
    %v780 = vtanh.pop %v779
    %v781 = vxor.u32 %v779, 2147483648
    %v782 = vmul.f32 %v781, 1.442695
    %v783 = vpow.pop %v782
    %v784 = vadd.f32 %v783, 1.0
    %v785 = vrcp.pop %v784
    %v786 = vmul.f32 %v784, %v785
    %v787 = vsub.f32 1.0, %v786
    %v788 = vmul.f32 %v785, %v787
    %v789 = vadd.f32 %v785, %v788
    %vm790 = vweird.f32 %v784
    %vm791 = vweird.f32 %v785
    %vm792 = vmor %vm790, %vm791
    %v793 = vsel %vm792, %v785, %v789
    %v794 = vand.u32 2147483647, %v784
    %vm795 = vcmp.eq.f32.partialorder %v794, 8.507059e+37
    %v796 = vand.u32 %v784, 2147483648
    %v797 = vor.u32 1.1754944e-38, %v796
    %v798 = vsel %vm795, %v797, %v793
    %v799 = vmul.f32 1.0, %v798
    %v800 = vsel %vm143, %v780, %v799
    %v802 = vrot.slane %v662, 6
    %v804 = vmul.f32 %v800, %v802
    %806 = vrot.lane.b32.xlu0 %v800, 64
    %v807 = vpop.permute.xlu0 %806
    %v809 = vmul.f32 %v800, %v807
    %811 = vrot.lane.b32.xlu0 %v809, 32
    %v812 = vpop.permute.xlu0 %811
    %v814 = vadd.f32 %v804, %v812
    %v815 = vtanh.pop %v814
    %817 = vrot.lane.b32.xlu0 %v815, 64
    %v818 = vpop.permute.xlu0 %817
    %v820 = vmul.f32 %v800, %v818
    %822 = vrot.lane.b32.xlu0 %v758, 32
    %v823 = vpop.permute.xlu0 %822
    %v824 = vsel %vm144, %v823, 0
    %826 = vmatpush.msra.mxu0 0.0
    %827 = vmatpush.msra.mxu0 0.0
    %828 = vmatpush.msra.mxu0 0.0
    %829 = vmatpush.msra.mxu0 0.0
    %830 = vmatpush.msra.mxu0 0.0
    %831 = vmatpush.msra.mxu0 0.0
    %832 = vmatpush.msra.mxu0 0.0
    %833 = vmatpush.msra.mxu0 0.0
    %834 = vmatpush.msra.mxu0 0.0
    %835 = vmatpush.msra.mxu0 0.0
    %836 = vmatpush.msra.mxu0 0.0
    %837 = vmatpush.msra.mxu0 0.0
    %838 = vmatpush.msra.mxu0 %v137
    %839 = vmatpush.msra.mxu0 %v136
    %840 = vmatpush.msra.mxu0 %v135
    %841 = vmatpush.msra.mxu0 %v134
    %842 = vmatmul.f32.gmra.mxu0 %v824
    %v843 = vpop.f32.mrf.mxu0
    %v844 = vadd.f32 0.0, %v843
    %845 = vdwg.mxu0
    %847 = vrot.lane.b32.xlu0 %v820, 32
    %v848 = vpop.permute.xlu0 %847
    %v849 = vsel %vm144, %v848, 0
    %851 = vmatpush.msra.mxu0 0.0
    %852 = vmatpush.msra.mxu0 0.0
    %853 = vmatpush.msra.mxu0 0.0
    %854 = vmatpush.msra.mxu0 0.0
    %855 = vmatpush.msra.mxu0 0.0
    %856 = vmatpush.msra.mxu0 0.0
    %857 = vmatpush.msra.mxu0 0.0
    %858 = vmatpush.msra.mxu0 0.0
    %859 = vmatpush.msra.mxu0 0.0
    %860 = vmatpush.msra.mxu0 0.0
    %861 = vmatpush.msra.mxu0 0.0
    %862 = vmatpush.msra.mxu0 0.0
    %863 = vmatpush.msra.mxu0 %v133
    %864 = vmatpush.msra.mxu0 %v132
    %865 = vmatpush.msra.mxu0 %v131
    %866 = vmatpush.msra.mxu0 %v130
    %867 = vmatmul.f32.gmra.mxu0 %v849
    %v868 = vpop.f32.mrf.mxu0
    %v869 = vadd.f32 %v844, %v868
    %870 = vdwg.mxu0
    %v871 = vadd.f32 %v869, %v253
    %v872 = vtanh.pop %v871
    %v873 = vxor.u32 %v871, 2147483648
    %v874 = vmul.f32 %v873, 1.442695
    %v875 = vpow.pop %v874
    %v876 = vadd.f32 %v875, 1.0
    %v877 = vrcp.pop %v876
    %v878 = vmul.f32 %v876, %v877
    %v879 = vsub.f32 1.0, %v878
    %v880 = vmul.f32 %v877, %v879
    %v881 = vadd.f32 %v877, %v880
    %vm882 = vweird.f32 %v876
    %vm883 = vweird.f32 %v877
    %vm884 = vmor %vm882, %vm883
    %v885 = vsel %vm884, %v877, %v881
    %v886 = vand.u32 2147483647, %v876
    %vm887 = vcmp.eq.f32.partialorder %v886, 8.507059e+37
    %v888 = vand.u32 %v876, 2147483648
    %v889 = vor.u32 1.1754944e-38, %v888
    %v890 = vsel %vm887, %v889, %v885
    %v891 = vmul.f32 1.0, %v890
    %v892 = vsel %vm143, %v872, %v891
    %v893 = vmul.f32 %v892, %v752
    %895 = vrot.lane.b32.xlu0 %v892, 64
    %v896 = vpop.permute.xlu0 %895
    %v898 = vmul.f32 %v892, %v896
    %900 = vrot.lane.b32.xlu0 %v898, 32
    %v901 = vpop.permute.xlu0 %900
    %v903 = vadd.f32 %v893, %v901
    %v904 = vtanh.pop %v903
    %906 = vrot.lane.b32.xlu0 %v904, 64
    %v907 = vpop.permute.xlu0 %906
    %v909 = vmul.f32 %v892, %v907
    %910 = vmatpush.msra.mxu0 0.0
    %911 = vmatpush.msra.mxu0 0.0
    %912 = vmatpush.msra.mxu0 0.0
    %913 = vmatpush.msra.mxu0 0.0
    %914 = vmatpush.msra.mxu0 0.0
    %915 = vmatpush.msra.mxu0 0.0
    %916 = vmatpush.msra.mxu0 0.0
    %917 = vmatpush.msra.mxu0 0.0
    %918 = vmatpush.msra.mxu0 0.0
    %919 = vmatpush.msra.mxu0 0.0
    %920 = vmatpush.msra.mxu0 0.0
    %921 = vmatpush.msra.mxu0 0.0
    %922 = vmatpush.msra.mxu0 %v129
    %923 = vmatpush.msra.mxu0 %v128
    %924 = vmatpush.msra.mxu0 %v127
    %925 = vmatpush.msra.mxu0 %v126
    %926 = vmatmul.f32.gmra.mxu0 %v849
    %v927 = vpop.f32.mrf.mxu0
    %v928 = vadd.f32 0.0, %v927
    %929 = vdwg.mxu0
    %v931 = vrot.slane %v928, 6
    %v933 = vadd.f32 %v124, %v931
    %v934 = vtanh.pop %v933
    %v935 = vxor.u32 %v933, 2147483648
    %v936 = vmul.f32 %v935, 1.442695
    %v937 = vpow.pop %v936
    %v938 = vadd.f32 %v937, 1.0
    %v939 = vrcp.pop %v938
    %v940 = vmul.f32 %v938, %v939
    %v941 = vsub.f32 1.0, %v940
    %v942 = vmul.f32 %v939, %v941
    %v943 = vadd.f32 %v939, %v942
    %vm944 = vweird.f32 %v938
    %vm945 = vweird.f32 %v939
    %vm946 = vmor %vm944, %vm945
    %v947 = vsel %vm946, %v939, %v943
    %v948 = vand.u32 2147483647, %v938
    %vm949 = vcmp.eq.f32.partialorder %v948, 8.507059e+37
    %v950 = vand.u32 %v938, 2147483648
    %v951 = vor.u32 1.1754944e-38, %v950
    %v952 = vsel %vm949, %v951, %v947
    %v953 = vmul.f32 1.0, %v952
    %v954 = vsel %vm143, %v934, %v953
    %v956 = vrot.slane %v814, 6
    %v958 = vmul.f32 %v954, %v956
    %960 = vrot.lane.b32.xlu0 %v954, 64
    %v961 = vpop.permute.xlu0 %960
    %v963 = vmul.f32 %v954, %v961
    %965 = vrot.lane.b32.xlu0 %v963, 32
    %v966 = vpop.permute.xlu0 %965
    %v968 = vadd.f32 %v958, %v966
    %v969 = vtanh.pop %v968
    %971 = vrot.lane.b32.xlu0 %v969, 64
    %v972 = vpop.permute.xlu0 %971
    %v974 = vmul.f32 %v954, %v972
    %976 = vrot.lane.b32.xlu0 %v909, 32
    %v977 = vpop.permute.xlu0 %976
    %v978 = vsel %vm144, %v977, 0
    %980 = vmatpush.msra.mxu0 0.0
    %981 = vmatpush.msra.mxu0 0.0
    %982 = vmatpush.msra.mxu0 0.0
    %983 = vmatpush.msra.mxu0 0.0
    %984 = vmatpush.msra.mxu0 0.0
    %985 = vmatpush.msra.mxu0 0.0
    %986 = vmatpush.msra.mxu0 0.0
    %987 = vmatpush.msra.mxu0 0.0
    %988 = vmatpush.msra.mxu0 0.0
    %989 = vmatpush.msra.mxu0 0.0
    %990 = vmatpush.msra.mxu0 0.0
    %991 = vmatpush.msra.mxu0 0.0
    %992 = vmatpush.msra.mxu0 %v137
    %993 = vmatpush.msra.mxu0 %v136
    %994 = vmatpush.msra.mxu0 %v135
    %995 = vmatpush.msra.mxu0 %v134
    %996 = vmatmul.f32.gmra.mxu0 %v978
    %v997 = vpop.f32.mrf.mxu0
    %v998 = vadd.f32 0.0, %v997
    %999 = vdwg.mxu0
    %v1001 = vrot.slane %v974, 2
    %1002 = vrot.lane.b32.xlu0 %v1001, 32
    %v1003 = vpop.permute.xlu0 %1002
    %v1004 = vsel %vm144, %v1003, 0
    %1006 = vmatpush.msra.mxu0 0.0
    %1007 = vmatpush.msra.mxu0 0.0
    %1008 = vmatpush.msra.mxu0 0.0
    %1009 = vmatpush.msra.mxu0 0.0
    %1010 = vmatpush.msra.mxu0 0.0
    %1011 = vmatpush.msra.mxu0 0.0
    %1012 = vmatpush.msra.mxu0 0.0
    %1013 = vmatpush.msra.mxu0 0.0
    %1014 = vmatpush.msra.mxu0 0.0
    %1015 = vmatpush.msra.mxu0 0.0
    %1016 = vmatpush.msra.mxu0 0.0
    %1017 = vmatpush.msra.mxu0 0.0
    %1018 = vmatpush.msra.mxu0 %v133
    %1019 = vmatpush.msra.mxu0 %v132
    %1020 = vmatpush.msra.mxu0 %v131
    %1021 = vmatpush.msra.mxu0 %v130
    %1022 = vmatmul.f32.gmra.mxu0 %v1004
    %v1023 = vpop.f32.mrf.mxu0
    %v1024 = vadd.f32 %v998, %v1023
    %1025 = vdwg.mxu0
    %v1026 = vadd.f32 %v1024, %v253
    %v1027 = vtanh.pop %v1026
    %v1028 = vxor.u32 %v1026, 2147483648
    %v1029 = vmul.f32 %v1028, 1.442695
    %v1030 = vpow.pop %v1029
    %v1031 = vadd.f32 %v1030, 1.0
    %v1032 = vrcp.pop %v1031
    %v1033 = vmul.f32 %v1031, %v1032
    %v1034 = vsub.f32 1.0, %v1033
    %v1035 = vmul.f32 %v1032, %v1034
    %v1036 = vadd.f32 %v1032, %v1035
    %vm1037 = vweird.f32 %v1031
    %vm1038 = vweird.f32 %v1032
    %vm1039 = vmor %vm1037, %vm1038
    %v1040 = vsel %vm1039, %v1032, %v1036
    %v1041 = vand.u32 2147483647, %v1031
    %vm1042 = vcmp.eq.f32.partialorder %v1041, 8.507059e+37
    %v1043 = vand.u32 %v1031, 2147483648
    %v1044 = vor.u32 1.1754944e-38, %v1043
    %v1045 = vsel %vm1042, %v1044, %v1040
    %v1046 = vmul.f32 1.0, %v1045
    %v1047 = vsel %vm143, %v1027, %v1046
    %v1048 = vmul.f32 %v1047, %v903
    %1050 = vrot.lane.b32.xlu0 %v1047, 64
    %v1051 = vpop.permute.xlu0 %1050
    %v1053 = vmul.f32 %v1047, %v1051
    %1055 = vrot.lane.b32.xlu0 %v1053, 32
    %v1056 = vpop.permute.xlu0 %1055
    %v1058 = vadd.f32 %v1048, %v1056
    %v1059 = vtanh.pop %v1058
    %1061 = vrot.lane.b32.xlu0 %v1059, 64
    %v1062 = vpop.permute.xlu0 %1061
    %v1064 = vmul.f32 %v1047, %v1062
    %1065 = vmatpush.msra.mxu0 0.0
    %1066 = vmatpush.msra.mxu0 0.0
    %1067 = vmatpush.msra.mxu0 0.0
    %1068 = vmatpush.msra.mxu0 0.0
    %1069 = vmatpush.msra.mxu0 0.0
    %1070 = vmatpush.msra.mxu0 0.0
    %1071 = vmatpush.msra.mxu0 0.0
    %1072 = vmatpush.msra.mxu0 0.0
    %1073 = vmatpush.msra.mxu0 0.0
    %1074 = vmatpush.msra.mxu0 0.0
    %1075 = vmatpush.msra.mxu0 0.0
    %1076 = vmatpush.msra.mxu0 0.0
    %1077 = vmatpush.msra.mxu0 %v129
    %1078 = vmatpush.msra.mxu0 %v128
    %1079 = vmatpush.msra.mxu0 %v127
    %1080 = vmatpush.msra.mxu0 %v126
    %1081 = vmatmul.f32.gmra.mxu0 %v1004
    %v1082 = vpop.f32.mrf.mxu0
    %v1083 = vadd.f32 0.0, %v1082
    %1084 = vdwg.mxu0
    %v1086 = vrot.slane %v1083, 4
    %v1088 = vadd.f32 %v124, %v1086
    %v1089 = vtanh.pop %v1088
    %v1090 = vxor.u32 %v1088, 2147483648
    %v1091 = vmul.f32 %v1090, 1.442695
    %v1092 = vpow.pop %v1091
    %v1093 = vadd.f32 %v1092, 1.0
    %v1094 = vrcp.pop %v1093
    %v1095 = vmul.f32 %v1093, %v1094
    %v1096 = vsub.f32 1.0, %v1095
    %v1097 = vmul.f32 %v1094, %v1096
    %v1098 = vadd.f32 %v1094, %v1097
    %vm1099 = vweird.f32 %v1093
    %vm1100 = vweird.f32 %v1094
    %vm1101 = vmor %vm1099, %vm1100
    %v1102 = vsel %vm1101, %v1094, %v1098
    %v1103 = vand.u32 2147483647, %v1093
    %vm1104 = vcmp.eq.f32.partialorder %v1103, 8.507059e+37
    %v1105 = vand.u32 %v1093, 2147483648
    %v1106 = vor.u32 1.1754944e-38, %v1105
    %v1107 = vsel %vm1104, %v1106, %v1102
    %v1108 = vmul.f32 1.0, %v1107
    %v1109 = vsel %vm143, %v1089, %v1108
    %v1111 = vrot.slane %v968, 6
    %v1113 = vmul.f32 %v1109, %v1111
    %1115 = vrot.lane.b32.xlu0 %v1109, 64
    %v1116 = vpop.permute.xlu0 %1115
    %v1118 = vmul.f32 %v1109, %v1116
    %1120 = vrot.lane.b32.xlu0 %v1118, 32
    %v1121 = vpop.permute.xlu0 %1120
    %v1123 = vadd.f32 %v1113, %v1121
    %v1124 = vtanh.pop %v1123
    %1126 = vrot.lane.b32.xlu0 %v1124, 64
    %v1127 = vpop.permute.xlu0 %1126
    %v1129 = vmul.f32 %v1109, %v1127
    %1131 = vrot.lane.b32.xlu0 %v1064, 32
    %v1132 = vpop.permute.xlu0 %1131
    %v1133 = vsel %vm144, %v1132, 0
    %1135 = vmatpush.msra.mxu0 0.0
    %1136 = vmatpush.msra.mxu0 0.0
    %1137 = vmatpush.msra.mxu0 0.0
    %1138 = vmatpush.msra.mxu0 0.0
    %1139 = vmatpush.msra.mxu0 0.0
    %1140 = vmatpush.msra.mxu0 0.0
    %1141 = vmatpush.msra.mxu0 0.0
    %1142 = vmatpush.msra.mxu0 0.0
    %1143 = vmatpush.msra.mxu0 0.0
    %1144 = vmatpush.msra.mxu0 0.0
    %1145 = vmatpush.msra.mxu0 0.0
    %1146 = vmatpush.msra.mxu0 0.0
    %1147 = vmatpush.msra.mxu0 %v137
    %1148 = vmatpush.msra.mxu0 %v136
    %1149 = vmatpush.msra.mxu0 %v135
    %1150 = vmatpush.msra.mxu0 %v134
    %1151 = vmatmul.f32.gmra.mxu0 %v1133
    %v1152 = vpop.f32.mrf.mxu0
    %v1153 = vadd.f32 0.0, %v1152
    %1154 = vdwg.mxu0
    %v1156 = vrot.slane %v1129, 4
    %1157 = vrot.lane.b32.xlu0 %v1156, 32
    %v1158 = vpop.permute.xlu0 %1157
    %v1159 = vsel %vm144, %v1158, 0
    %1161 = vmatpush.msra.mxu0 0.0
    %1162 = vmatpush.msra.mxu0 0.0
    %1163 = vmatpush.msra.mxu0 0.0
    %1164 = vmatpush.msra.mxu0 0.0
    %1165 = vmatpush.msra.mxu0 0.0
    %1166 = vmatpush.msra.mxu0 0.0
    %1167 = vmatpush.msra.mxu0 0.0
    %1168 = vmatpush.msra.mxu0 0.0
    %1169 = vmatpush.msra.mxu0 0.0
    %1170 = vmatpush.msra.mxu0 0.0
    %1171 = vmatpush.msra.mxu0 0.0
    %1172 = vmatpush.msra.mxu0 0.0
    %1173 = vmatpush.msra.mxu0 %v133
    %1174 = vmatpush.msra.mxu0 %v132
    %1175 = vmatpush.msra.mxu0 %v131
    %1176 = vmatpush.msra.mxu0 %v130
    %1177 = vmatmul.f32.gmra.mxu0 %v1159
    %v1178 = vpop.f32.mrf.mxu0
    %v1179 = vadd.f32 %v1153, %v1178
    %1180 = vdwg.mxu0
    %v1181 = vadd.f32 %v1179, %v253
    %v1182 = vtanh.pop %v1181
    %v1183 = vxor.u32 %v1181, 2147483648
    %v1184 = vmul.f32 %v1183, 1.442695
    %v1185 = vpow.pop %v1184
    %v1186 = vadd.f32 %v1185, 1.0
    %v1187 = vrcp.pop %v1186
    %v1188 = vmul.f32 %v1186, %v1187
    %v1189 = vsub.f32 1.0, %v1188
    %v1190 = vmul.f32 %v1187, %v1189
    %v1191 = vadd.f32 %v1187, %v1190
    %vm1192 = vweird.f32 %v1186
    %vm1193 = vweird.f32 %v1187
    %vm1194 = vmor %vm1192, %vm1193
    %v1195 = vsel %vm1194, %v1187, %v1191
    %v1196 = vand.u32 2147483647, %v1186
    %vm1197 = vcmp.eq.f32.partialorder %v1196, 8.507059e+37
    %v1198 = vand.u32 %v1186, 2147483648
    %v1199 = vor.u32 1.1754944e-38, %v1198
    %v1200 = vsel %vm1197, %v1199, %v1195
    %v1201 = vmul.f32 1.0, %v1200
    %v1202 = vsel %vm143, %v1182, %v1201
    %v1203 = vmul.f32 %v1202, %v1058
    %1205 = vrot.lane.b32.xlu0 %v1202, 64
    %v1206 = vpop.permute.xlu0 %1205
    %v1208 = vmul.f32 %v1202, %v1206
    %1210 = vrot.lane.b32.xlu0 %v1208, 32
    %v1211 = vpop.permute.xlu0 %1210
    %v1213 = vadd.f32 %v1203, %v1211
    %v1214 = vtanh.pop %v1213
    %1216 = vrot.lane.b32.xlu0 %v1214, 64
    %v1217 = vpop.permute.xlu0 %1216
    %v1219 = vmul.f32 %v1202, %v1217
    %1220 = vmatpush.msra.mxu0 0.0
    %1221 = vmatpush.msra.mxu0 0.0
    %1222 = vmatpush.msra.mxu0 0.0
    %1223 = vmatpush.msra.mxu0 0.0
    %1224 = vmatpush.msra.mxu0 0.0
    %1225 = vmatpush.msra.mxu0 0.0
    %1226 = vmatpush.msra.mxu0 0.0
    %1227 = vmatpush.msra.mxu0 0.0
    %1228 = vmatpush.msra.mxu0 0.0
    %1229 = vmatpush.msra.mxu0 0.0
    %1230 = vmatpush.msra.mxu0 0.0
    %1231 = vmatpush.msra.mxu0 0.0
    %1232 = vmatpush.msra.mxu0 %v129
    %1233 = vmatpush.msra.mxu0 %v128
    %1234 = vmatpush.msra.mxu0 %v127
    %1235 = vmatpush.msra.mxu0 %v126
    %1236 = vmatmul.f32.gmra.mxu0 %v1159
    %v1237 = vpop.f32.mrf.mxu0
    %v1238 = vadd.f32 0.0, %v1237
    %1239 = vdwg.mxu0
    %v1241 = vrot.slane %v1238, 2
    %v1243 = vadd.f32 %v124, %v1241
    %v1244 = vtanh.pop %v1243
    %v1245 = vxor.u32 %v1243, 2147483648
    %v1246 = vmul.f32 %v1245, 1.442695
    %v1247 = vpow.pop %v1246
    %v1248 = vadd.f32 %v1247, 1.0
    %v1249 = vrcp.pop %v1248
    %v1250 = vmul.f32 %v1248, %v1249
    %v1251 = vsub.f32 1.0, %v1250
    %v1252 = vmul.f32 %v1249, %v1251
    %v1253 = vadd.f32 %v1249, %v1252
    %vm1254 = vweird.f32 %v1248
    %vm1255 = vweird.f32 %v1249
    %vm1256 = vmor %vm1254, %vm1255
    %v1257 = vsel %vm1256, %v1249, %v1253
    %v1258 = vand.u32 2147483647, %v1248
    %vm1259 = vcmp.eq.f32.partialorder %v1258, 8.507059e+37
    %v1260 = vand.u32 %v1248, 2147483648
    %v1261 = vor.u32 1.1754944e-38, %v1260
    %v1262 = vsel %vm1259, %v1261, %v1257
    %v1263 = vmul.f32 1.0, %v1262
    %v1264 = vsel %vm143, %v1244, %v1263
    %v1266 = vrot.slane %v1123, 6
    %v1268 = vmul.f32 %v1264, %v1266
    %1270 = vrot.lane.b32.xlu0 %v1264, 64
    %v1271 = vpop.permute.xlu0 %1270
    %v1273 = vmul.f32 %v1264, %v1271
    %1275 = vrot.lane.b32.xlu0 %v1273, 32
    %v1276 = vpop.permute.xlu0 %1275
    %v1278 = vadd.f32 %v1268, %v1276
    %v1279 = vtanh.pop %v1278
    %1281 = vrot.lane.b32.xlu0 %v1279, 64
    %v1282 = vpop.permute.xlu0 %1281
    %v1284 = vmul.f32 %v1264, %v1282
    %1286 = vrot.lane.b32.xlu0 %v1219, 32
    %v1287 = vpop.permute.xlu0 %1286
    %v1288 = vsel %vm144, %v1287, 0
    %1290 = vmatpush.msra.mxu0 0.0
    %1291 = vmatpush.msra.mxu0 0.0
    %1292 = vmatpush.msra.mxu0 0.0
    %1293 = vmatpush.msra.mxu0 0.0
    %1294 = vmatpush.msra.mxu0 0.0
    %1295 = vmatpush.msra.mxu0 0.0
    %1296 = vmatpush.msra.mxu0 0.0
    %1297 = vmatpush.msra.mxu0 0.0
    %1298 = vmatpush.msra.mxu0 0.0
    %1299 = vmatpush.msra.mxu0 0.0
    %1300 = vmatpush.msra.mxu0 0.0
    %1301 = vmatpush.msra.mxu0 0.0
    %1302 = vmatpush.msra.mxu0 %v137
    %1303 = vmatpush.msra.mxu0 %v136
    %1304 = vmatpush.msra.mxu0 %v135
    %1305 = vmatpush.msra.mxu0 %v134
    %1306 = vmatmul.f32.gmra.mxu0 %v1288
    %v1307 = vpop.f32.mrf.mxu0
    %v1308 = vadd.f32 0.0, %v1307
    %1309 = vdwg.mxu0
    %v1311 = vrot.slane %v1284, 6
    %1312 = vrot.lane.b32.xlu0 %v1311, 32
    %v1313 = vpop.permute.xlu0 %1312
    %v1314 = vsel %vm144, %v1313, 0
    %1316 = vmatpush.msra.mxu0 0.0
    %1317 = vmatpush.msra.mxu0 0.0
    %1318 = vmatpush.msra.mxu0 0.0
    %1319 = vmatpush.msra.mxu0 0.0
    %1320 = vmatpush.msra.mxu0 0.0
    %1321 = vmatpush.msra.mxu0 0.0
    %1322 = vmatpush.msra.mxu0 0.0
    %1323 = vmatpush.msra.mxu0 0.0
    %1324 = vmatpush.msra.mxu0 0.0
    %1325 = vmatpush.msra.mxu0 0.0
    %1326 = vmatpush.msra.mxu0 0.0
    %1327 = vmatpush.msra.mxu0 0.0
    %1328 = vmatpush.msra.mxu0 %v133
    %1329 = vmatpush.msra.mxu0 %v132
    %1330 = vmatpush.msra.mxu0 %v131
    %1331 = vmatpush.msra.mxu0 %v130
    %1332 = vmatmul.f32.gmra.mxu0 %v1314
    %v1333 = vpop.f32.mrf.mxu0
    %v1334 = vadd.f32 %v1308, %v1333
    %1335 = vdwg.mxu0
    %v1336 = vadd.f32 %v1334, %v253
    %v1337 = vtanh.pop %v1336
    %v1338 = vxor.u32 %v1336, 2147483648
    %v1339 = vmul.f32 %v1338, 1.442695
    %v1340 = vpow.pop %v1339
    %v1341 = vadd.f32 %v1340, 1.0
    %v1342 = vrcp.pop %v1341
    %v1343 = vmul.f32 %v1341, %v1342
    %v1344 = vsub.f32 1.0, %v1343
    %v1345 = vmul.f32 %v1342, %v1344
    %v1346 = vadd.f32 %v1342, %v1345
    %vm1347 = vweird.f32 %v1341
    %vm1348 = vweird.f32 %v1342
    %vm1349 = vmor %vm1347, %vm1348
    %v1350 = vsel %vm1349, %v1342, %v1346
    %v1351 = vand.u32 2147483647, %v1341
    %vm1352 = vcmp.eq.f32.partialorder %v1351, 8.507059e+37
    %v1353 = vand.u32 %v1341, 2147483648
    %v1354 = vor.u32 1.1754944e-38, %v1353
    %v1355 = vsel %vm1352, %v1354, %v1350
    %v1356 = vmul.f32 1.0, %v1355
    %v1357 = vsel %vm143, %v1337, %v1356
    %v1358 = vmul.f32 %v1357, %v1213
    %1360 = vrot.lane.b32.xlu0 %v1357, 64
    %v1361 = vpop.permute.xlu0 %1360
    %v1363 = vmul.f32 %v1357, %v1361
    %1365 = vrot.lane.b32.xlu0 %v1363, 32
    %v1366 = vpop.permute.xlu0 %1365
    %v1368 = vadd.f32 %v1358, %v1366
    %v1369 = vtanh.pop %v1368
    %1371 = vrot.lane.b32.xlu0 %v1369, 64
    %v1372 = vpop.permute.xlu0 %1371
    %v1374 = vmul.f32 %v1357, %v1372
    %v1375 = vld [vmem:[%s7] sm:$0x1]
    %v1377 = vperm.slane %v1375, 0
    %1378 = vrot.lane.b32.xlu0 %v1377, 96
    %v1379 = vpop.permute.xlu0 %1378
    %v1381 = vmul.f32 %v1374, %v1379
    %1383 = vrot.lane.b32.xlu0 %v1381, 32
    %v1384 = vpop.permute.xlu0 %1383
    %vm1386 = vcmask 254976
    %v1387 = vsel %vm1386, %v1384, 0.0
    %1388 = vadd.xlane.f32.xlu0 %v1387
    %v1389 = vpop.xlane.xlu0 %1388
    %v1390 = vld [vmem:[#allocation2] sm:$0x1]
    %v1392 = vperm.slane %v1390, 0
    %v1394 = vadd.f32 %v1389, %v1392
    %v1395 = vxor.u32 %v1394, 2147483648
    %v1396 = vmul.f32 %v1395, 1.442695
    %v1397 = vpow.pop %v1396
    %v1398 = vadd.f32 %v1397, 1.0
    %v1399 = vrcp.pop %v1398
    %v1400 = vmul.f32 %v1398, %v1399
    %v1401 = vsub.f32 1.0, %v1400
    %v1402 = vmul.f32 %v1399, %v1401
    %v1403 = vadd.f32 %v1399, %v1402
    %vm1404 = vweird.f32 %v1398
    %vm1405 = vweird.f32 %v1399
    %vm1406 = vmor %vm1404, %vm1405
    %v1407 = vsel %vm1406, %v1399, %v1403
    %v1408 = vand.u32 2147483647, %v1398
    %vm1409 = vcmp.eq.f32.partialorder %v1408, 8.507059e+37
    %v1410 = vand.u32 %v1398, 2147483648
    %v1411 = vor.u32 1.1754944e-38, %v1410
    %v1412 = vsel %vm1409, %v1411, %v1407
    %v1413 = vmul.f32 1.0, %v1412
    %vm1414 = vcmask 1024
    %1415 = vst.msk [vmem:[%s9] sm:$0x3] %vm1414, %v1413
    %1416 = vst.msk [vmem:[%s10] sm:$0x3] %vm1414, %v1394
    %1418 = vrot.lane.b32.xlu0 %v1374, 32
    %v1419 = vpop.permute.xlu0 %1418
    %1421 = vst.msk [vmem:[#allocation9] sm:$0x3] %vm1386, %v1419
    // Predicated region
    $region50: #{tpu_custom_call.1} parent=1 // pred_check
      _
    $region51: #{tpu_custom_call.1} parent=1 // pred_check_branch
      %1423 = sbr.rel (0) target = $region53
    $region52: #{tpu_custom_call.1} parent=1 // pred_region
      _
    $region53: #{tpu_custom_call.1} parent=1 // pred_fallthru
      _
    // Predicated region
    $region54: #{tpu_custom_call.1} parent=1 // pred_check
      _
    $region55: #{tpu_custom_call.1} parent=1 // pred_check_branch
      %1425 = sbr.rel (0) target = $region57
    $region56: #{tpu_custom_call.1} parent=1 // pred_region
      _
    $region57: #{tpu_custom_call.1} parent=1 // pred_fallthru
      _
    // Predicated region
    $region58: #{tpu_custom_call.1} parent=1 // pred_check
      _
    $region59: #{tpu_custom_call.1} parent=1 // pred_check_branch
      %1427 = sbr.rel (0) target = $region61
    $region60: #{tpu_custom_call.1} parent=1 // pred_region
      %1429 = vsyncadd [#allocation5], 0
      %s1431 = sshll.u32 [#allocation9], 4
      %s1432 = int_to_ptr.vmem [resolvable:$true] %s1431
      %s1433 = sshll.u32 %s11, 4
      %s1434 = int_to_ptr.hbm [resolvable:$true] %s1433
      %1436 = dma.vmem_to_hbm [thread:$0]  %s1432, 32, %s1434, [#allocation5]
    $region61: #{tpu_custom_call.1} parent=1 // pred_fallthru
      _
    // Predicated region
    $region62: #{tpu_custom_call.1} parent=1 // pred_check
      _
    $region63: #{tpu_custom_call.1} parent=1 // pred_check_branch
      %1438 = sbr.rel (0) target = $region65
    $region64: #{tpu_custom_call.1} parent=1 // pred_region
      _
    $region65: #{tpu_custom_call.1} parent=1 // pred_fallthru
      _
    // Predicated region
    $region66: #{tpu_custom_call.1} parent=1 // pred_check
      _
    $region67: #{tpu_custom_call.1} parent=1 // pred_check_branch
      %1440 = sbr.rel (0) target = $region69
    $region68: #{tpu_custom_call.1} parent=1 // pred_region
      _
    $region69: #{tpu_custom_call.1} parent=1 // pred_fallthru
      _
    // Predicated region
    $region70: #{tpu_custom_call.1} parent=1 // pred_check
      _
    $region71: #{tpu_custom_call.1} parent=1 // pred_check_branch
      %1442 = sbr.rel (0) target = $region73
    $region72: #{tpu_custom_call.1} parent=1 // pred_region
      %1444 = dma.done [#allocation5], 32
    $region73: #{tpu_custom_call.1} parent=1 // pred_fallthru
      _
    %1445 = vsyncpa [#allocation4], 1
    %1446 = vsyncpa [#allocation7], 1
    %1447 = vsyncpa [#allocation5], 1

</llo_original>
